<compile_context>
chip_gen: v7x
topology: tpu7x:2x2x1
jax: 0.10.0
libtpu: 0.0.40
codegen_flags: <defaults>
</compile_context>

<pallas_src>
import jax
import jax.numpy as jnp
from jax import lax
from jax.experimental import pallas as pl
from jax.experimental.pallas import tpu as pltpu


def _make_block_kernel(L: int, H: int, C: int):
    """Per-batch-row kernel.

    Operands (per grid step):
      x_ref   : (C, L) f32       — one batch row, channels on sublanes, L on lanes
      wK_ref  : (3, H, Cin) f32  — tap-indexed weight slabs [x[l-1] | x[l] | x[l+1]]
      p_ref   : (6, H, 1) f32    — [b0, b1, b2, b3, bn_scale, bn_shift]
      out_ref : (H + C, L) f32   — cat((bn_out, x), channel axis)
    """

    def kernel(x_ref, w0_ref, w1_ref, w2_ref, w3_ref, p_ref, out_ref):
        f32 = jnp.float32

        # Conv1d(padding=1) boundary masks: zero the circular wrap of the XLU rolls at
        # l=0 / l=L-1.  Built & broadcast ONCE, reused by all 4 layers (no per-layer
        # re-broadcast — JAX does not CSE broadcast_in_dim).
        col = lax.broadcasted_iota(jnp.int32, (1, L), 1)
        ml_1 = (col != 0).astype(f32)         # kill wrapped column feeding the left tap
        mr_1 = (col != (L - 1)).astype(f32)   # kill wrapped column feeding the right tap
        ml_h = jnp.broadcast_to(ml_1, (H, L))
        mr_h = jnp.broadcast_to(mr_1, (H, L))
        if C == H:
            ml_c, mr_c = ml_h, mr_h
        else:
            ml_c = jnp.broadcast_to(ml_1, (C, L))
            mr_c = jnp.broadcast_to(mr_1, (C, L))

        def conv3_relu(h, w_ref, b, mask_l, mask_r):
            # out[:, l] = W0 @ h[:, l-1] + W1 @ h[:, l] + W2 @ h[:, l+1]   (zero padded)
            # Three accumulating MXU dots; shifts come from pltpu.roll (XLU slot) + mask.
            h_left = pltpu.roll(h, 1, 1) * mask_l        # h[:, l-1], zero at l = 0
            h_right = pltpu.roll(h, L - 1, 1) * mask_r   # h[:, l+1], zero at l = L-1
            acc = jnp.dot(w_ref[1], h, preferred_element_type=f32)
            acc += jnp.dot(w_ref[0], h_left, preferred_element_type=f32)
            acc += jnp.dot(w_ref[2], h_right, preferred_element_type=f32)
            return jnp.maximum(acc + b, 0.0)

        x = x_ref[...]
        h = conv3_relu(x, w0_ref, p_ref[0], ml_c, mr_c)
        h = conv3_relu(h, w1_ref, p_ref[1], ml_h, mr_h)
        h = conv3_relu(h, w2_ref, p_ref[2], ml_h, mr_h)
        h = conv3_relu(h, w3_ref, p_ref[3], ml_h, mr_h)

        # Dropout(0.3): identity in eval.  BatchNorm1d (eval): folded scale/shift.
        h = h * p_ref[4] + p_ref[5]

        # torch.cat((bn_out, inputs), dim=1).  H % 8 == 0 keeps both stores starting on a
        # sublane-tile boundary (no masked vst for the big store).
        out_ref[0:H, :] = h.astype(out_ref.dtype)
        out_ref[H:H + C, :] = x

    return kernel


def block_forward(x, params, eps=1e-5):
    """x: (B, C, L) float32 -> (B, H + C, L). Eval-mode Block forward."""
    B, C, L = x.shape
    H = params["w0"].shape[0]
    assert H % 8 == 0, "H must be a multiple of 8 (sublane-aligned concat stores)"
    assert L % 128 == 0, "L must be a multiple of 128 (lane-dense tiles)"

    def prep_w(w):
        # (H, Cin, 3) -> (3, H, Cin): tap-indexed weight slabs for the 3 accumulating dots.
        return jnp.transpose(w, (2, 0, 1)).astype(jnp.float32)

    scale = params["gamma"] / jnp.sqrt(params["rvar"] + eps)
    shift = params["beta"] - params["rmean"] * scale
    pvec = jnp.stack(
        [params["b0"], params["b1"], params["b2"], params["b3"], scale, shift], axis=0
    ).reshape(6, H, 1).astype(jnp.float32)

    args = (x, prep_w(params["w0"]), prep_w(params["w1"]),
            prep_w(params["w2"]), prep_w(params["w3"]), pvec)

    def full_spec(a):
        return pl.BlockSpec(a.shape, lambda *_g, _n=a.ndim: (0,) * _n)

    flops = 2 * B * L * 3 * (C * H + 3 * H * H)
    bytes_accessed = (x.size + B * (H + C) * L) * 4 \
        + sum(int(a.size) * 4 for a in args[1:])

    out = pl.pallas_call(
        _make_block_kernel(L, H, C),
        out_shape=jax.ShapeDtypeStruct((B, H + C, L), x.dtype),
        grid=(B,),
        in_specs=[pl.BlockSpec((None, C, L), lambda b: (b, 0, 0))]
                 + [full_spec(a) for a in args[1:]],
        out_specs=pl.BlockSpec((None, H + C, L), lambda b: (b, 0, 0)),
        compiler_params=pltpu.CompilerParams(
            dimension_semantics=("parallel",)),
        cost_estimate=pl.CostEstimate(
            flops=int(flops), transcendentals=0, bytes_accessed=int(bytes_accessed)),
    )(*args)
    return out


def block_reference(x, params, eps=1e-5):
    """Pure-JAX f32 reference (mirrors the PyTorch forward in eval mode)."""
    h = x
    for i in range(4):
        w, b = params[f"w{i}"], params[f"b{i}"]
        h = lax.conv_general_dilated(h, w, window_strides=(1,), padding=((1, 1),),
                                     dimension_numbers=("NCH", "OIH", "NCH"))
        h = h + b[None, :, None]
        h = jnp.maximum(h, 0.0)
    scale = params["gamma"] / jnp.sqrt(params["rvar"] + eps)
    h = (h - params["rmean"][None, :, None]) * scale[None, :, None] + params["beta"][None, :, None]
    return jnp.concatenate([h, x], axis=1)


def make_params(key, channel_size, hidden_size):
    ks = jax.random.split(key, 12)
    H, C = hidden_size, channel_size
    return {
        "w0": 0.2 * jax.random.normal(ks[0], (H, C, 3), jnp.float32),
        "b0": 0.05 * jax.random.normal(ks[1], (H,), jnp.float32),
        "w1": 0.2 * jax.random.normal(ks[2], (H, H, 3), jnp.float32),
        "b1": 0.05 * jax.random.normal(ks[3], (H,), jnp.float32),
        "w2": 0.2 * jax.random.normal(ks[4], (H, H, 3), jnp.float32),
        "b2": 0.05 * jax.random.normal(ks[5], (H,), jnp.float32),
        "w3": 0.2 * jax.random.normal(ks[6], (H, H, 3), jnp.float32),
        "b3": 0.05 * jax.random.normal(ks[7], (H,), jnp.float32),
        "gamma": 1.0 + 0.1 * jax.random.normal(ks[8], (H,), jnp.float32),
        "beta": 0.05 * jax.random.normal(ks[9], (H,), jnp.float32),
        "rmean": 0.1 * jax.random.normal(ks[10], (H,), jnp.float32),
        "rvar": 0.5 + jnp.abs(0.5 * jax.random.normal(ks[11], (H,), jnp.float32)),
    }


if __name__ == "__main__":
    B, C, H, L = 4, 4, 32, 128          # batch, channel_size, hidden_size, sequence length
    key = jax.random.PRNGKey(0)
    k_param, k_x = jax.random.split(key)
    params = make_params(k_param, C, H)
    x = jax.random.normal(k_x, (B, C, L), jnp.float32)

    out = jax.block_until_ready(block_forward(x, params))
    ref = jax.block_until_ready(block_reference(x, params))

    assert out.shape == (B, H + C, L), out.shape
    # f32 operands throughout (no bf16 casts) -> tight, scale-aware tolerance.
    err = float(jnp.max(jnp.abs(out - ref)))
    tol = 2e-2 * float(jnp.max(jnp.abs(ref))) + 2e-2
    assert err <= tol, (err, tol)
    print("KERNEL_OK")
</pallas_src>

<mosaic_0001>
module attributes {stable_mosaic.version = 11 : i64} {
  func.func @kernel(%arg0: i32, %arg1: memref<1x4x128xf32, #tpu.memory_space<vmem>>, %arg2: memref<3x32x4xf32, #tpu.memory_space<vmem>>, %arg3: memref<3x32x32xf32, #tpu.memory_space<vmem>>, %arg4: memref<3x32x32xf32, #tpu.memory_space<vmem>>, %arg5: memref<3x32x32xf32, #tpu.memory_space<vmem>>, %arg6: memref<6x32x1xf32, #tpu.memory_space<vmem>>, %arg7: memref<1x36x128xf32, #tpu.memory_space<vmem>>) attributes {dimension_semantics = [#tpu.dimension_semantics<parallel>], iteration_bounds = array<i64: 4>, scalar_prefetch = 0 : i64, scratch_operands = 0 : i64, tpu.core_type = #tpu.core_type<tc>, window_params = [{transform_indices = @transform_0, window_bounds = array<i64: 1, 4, 128>}, {pipeline_mode = #tpu.pipeline_mode<synchronous>, transform_indices = @transform_1, window_bounds = array<i64: 3, 32, 4>}, {pipeline_mode = #tpu.pipeline_mode<synchronous>, transform_indices = @transform_2, window_bounds = array<i64: 3, 32, 32>}, {pipeline_mode = #tpu.pipeline_mode<synchronous>, transform_indices = @transform_3, window_bounds = array<i64: 3, 32, 32>}, {pipeline_mode = #tpu.pipeline_mode<synchronous>, transform_indices = @transform_4, window_bounds = array<i64: 3, 32, 32>}, {pipeline_mode = #tpu.pipeline_mode<synchronous>, transform_indices = @transform_5, window_bounds = array<i64: 6, 32, 1>}, {transform_indices = @transform_6, window_bounds = array<i64: 1, 36, 128>}]} {
    %0 = tpu.iota {dimensions = array<i32: 1>} : vector<1x128xi32>
    %c0_i32 = arith.constant 0 : i32
    %1 = vector.broadcast %c0_i32 : i32 to vector<1x128xi32>
    %2 = arith.cmpi ne, %0, %1 : vector<1x128xi32>
    %3 = arith.extui %2 : vector<1x128xi1> to vector<1x128xi32>
    %4 = arith.sitofp %3 : vector<1x128xi32> to vector<1x128xf32>
    %c127_i32 = arith.constant 127 : i32
    %5 = vector.broadcast %c127_i32 : i32 to vector<1x128xi32>
    %6 = arith.cmpi ne, %0, %5 : vector<1x128xi32>
    %7 = arith.extui %6 : vector<1x128xi1> to vector<1x128xi32>
    %8 = arith.sitofp %7 : vector<1x128xi32> to vector<1x128xf32>
    %9 = vector.shape_cast %4 : vector<1x128xf32> to vector<1x128xf32>
    %10 = vector.broadcast %9 : vector<1x128xf32> to vector<32x128xf32>
    %11 = vector.shape_cast %8 : vector<1x128xf32> to vector<1x128xf32>
    %12 = vector.broadcast %11 : vector<1x128xf32> to vector<32x128xf32>
    %13 = vector.shape_cast %4 : vector<1x128xf32> to vector<1x128xf32>
    %14 = vector.broadcast %13 : vector<1x128xf32> to vector<4x128xf32>
    %15 = vector.shape_cast %8 : vector<1x128xf32> to vector<1x128xf32>
    %16 = vector.broadcast %15 : vector<1x128xf32> to vector<4x128xf32>
    %c0 = arith.constant 0 : index
    %c0_0 = arith.constant 0 : index
    %c0_1 = arith.constant 0 : index
    %17 = vector.load %arg1[%c0, %c0_0, %c0_1] : memref<1x4x128xf32, #tpu.memory_space<vmem>>, vector<1x4x128xf32>
    %18 = vector.shape_cast %17 : vector<1x4x128xf32> to vector<4x128xf32>
    %c0_2 = arith.constant 0 : index
    %c0_3 = arith.constant 0 : index
    %c0_4 = arith.constant 0 : index
    %19 = vector.load %arg6[%c0_2, %c0_3, %c0_4] : memref<6x32x1xf32, #tpu.memory_space<vmem>>, vector<1x32x1xf32>
    %20 = vector.shape_cast %19 : vector<1x32x1xf32> to vector<32x1xf32>
    %c1_i32 = arith.constant 1 : i32
    %21 = tpu.dynamic_rotate %18 by %c1_i32 dim 1 : vector<4x128xf32>, i32 -> vector<4x128xf32>
    %22 = arith.mulf %21, %14 : vector<4x128xf32>
    %c127_i32_5 = arith.constant 127 : i32
    %23 = tpu.dynamic_rotate %18 by %c127_i32_5 dim 1 : vector<4x128xf32>, i32 -> vector<4x128xf32>
    %24 = arith.mulf %23, %16 : vector<4x128xf32>
    %c1 = arith.constant 1 : index
    %c0_6 = arith.constant 0 : index
    %c0_7 = arith.constant 0 : index
    %25 = vector.load %arg2[%c1, %c0_6, %c0_7] : memref<3x32x4xf32, #tpu.memory_space<vmem>>, vector<1x32x4xf32>
    %26 = vector.shape_cast %25 : vector<1x32x4xf32> to vector<32x4xf32>
    %cst = arith.constant dense<0.000000e+00> : vector<32x128xf32>
    %27 = tpu.matmul %26, %18, %cst {dimension_numbers = #tpu.dot_dimension_numbers<[1], [0], [0], [1], [0, 0, 1, 1], [], []>} : vector<32x4xf32>, vector<4x128xf32>, vector<32x128xf32> -> vector<32x128xf32>
    %c0_8 = arith.constant 0 : index
    %c0_9 = arith.constant 0 : index
    %c0_10 = arith.constant 0 : index
    %28 = vector.load %arg2[%c0_8, %c0_9, %c0_10] : memref<3x32x4xf32, #tpu.memory_space<vmem>>, vector<1x32x4xf32>
    %29 = vector.shape_cast %28 : vector<1x32x4xf32> to vector<32x4xf32>
    %cst_11 = arith.constant dense<0.000000e+00> : vector<32x128xf32>
    %30 = tpu.matmul %29, %22, %cst_11 {dimension_numbers = #tpu.dot_dimension_numbers<[1], [0], [0], [1], [0, 0, 1, 1], [], []>} : vector<32x4xf32>, vector<4x128xf32>, vector<32x128xf32> -> vector<32x128xf32>
    %31 = arith.addf %27, %30 : vector<32x128xf32>
    %c2 = arith.constant 2 : index
    %c0_12 = arith.constant 0 : index
    %c0_13 = arith.constant 0 : index
    %32 = vector.load %arg2[%c2, %c0_12, %c0_13] : memref<3x32x4xf32, #tpu.memory_space<vmem>>, vector<1x32x4xf32>
    %33 = vector.shape_cast %32 : vector<1x32x4xf32> to vector<32x4xf32>
    %cst_14 = arith.constant dense<0.000000e+00> : vector<32x128xf32>
    %34 = tpu.matmul %33, %24, %cst_14 {dimension_numbers = #tpu.dot_dimension_numbers<[1], [0], [0], [1], [0, 0, 1, 1], [], []>} : vector<32x4xf32>, vector<4x128xf32>, vector<32x128xf32> -> vector<32x128xf32>
    %35 = arith.addf %31, %34 : vector<32x128xf32>
    %36 = vector.broadcast %20 : vector<32x1xf32> to vector<32x128xf32>
    %37 = arith.addf %35, %36 : vector<32x128xf32>
    %cst_15 = arith.constant 0.000000e+00 : f32
    %38 = vector.broadcast %cst_15 : f32 to vector<32x128xf32>
    %39 = arith.maximumf %37, %38 : vector<32x128xf32>
    %c1_16 = arith.constant 1 : index
    %c0_17 = arith.constant 0 : index
    %c0_18 = arith.constant 0 : index
    %40 = vector.load %arg6[%c1_16, %c0_17, %c0_18] : memref<6x32x1xf32, #tpu.memory_space<vmem>>, vector<1x32x1xf32>
    %41 = vector.shape_cast %40 : vector<1x32x1xf32> to vector<32x1xf32>
    %c1_i32_19 = arith.constant 1 : i32
    %42 = tpu.dynamic_rotate %39 by %c1_i32_19 dim 1 : vector<32x128xf32>, i32 -> vector<32x128xf32>
    %43 = arith.mulf %42, %10 : vector<32x128xf32>
    %c127_i32_20 = arith.constant 127 : i32
    %44 = tpu.dynamic_rotate %39 by %c127_i32_20 dim 1 : vector<32x128xf32>, i32 -> vector<32x128xf32>
    %45 = arith.mulf %44, %12 : vector<32x128xf32>
    %c1_21 = arith.constant 1 : index
    %c0_22 = arith.constant 0 : index
    %c0_23 = arith.constant 0 : index
    %46 = vector.load %arg3[%c1_21, %c0_22, %c0_23] : memref<3x32x32xf32, #tpu.memory_space<vmem>>, vector<1x32x32xf32>
    %47 = vector.shape_cast %46 : vector<1x32x32xf32> to vector<32x32xf32>
    %cst_24 = arith.constant dense<0.000000e+00> : vector<32x128xf32>
    %48 = tpu.matmul %47, %39, %cst_24 {dimension_numbers = #tpu.dot_dimension_numbers<[1], [0], [0], [1], [0, 0, 1, 1], [], []>} : vector<32x32xf32>, vector<32x128xf32>, vector<32x128xf32> -> vector<32x128xf32>
    %c0_25 = arith.constant 0 : index
    %c0_26 = arith.constant 0 : index
    %c0_27 = arith.constant 0 : index
    %49 = vector.load %arg3[%c0_25, %c0_26, %c0_27] : memref<3x32x32xf32, #tpu.memory_space<vmem>>, vector<1x32x32xf32>
    %50 = vector.shape_cast %49 : vector<1x32x32xf32> to vector<32x32xf32>
    %cst_28 = arith.constant dense<0.000000e+00> : vector<32x128xf32>
    %51 = tpu.matmul %50, %43, %cst_28 {dimension_numbers = #tpu.dot_dimension_numbers<[1], [0], [0], [1], [0, 0, 1, 1], [], []>} : vector<32x32xf32>, vector<32x128xf32>, vector<32x128xf32> -> vector<32x128xf32>
    %52 = arith.addf %48, %51 : vector<32x128xf32>
    %c2_29 = arith.constant 2 : index
    %c0_30 = arith.constant 0 : index
    %c0_31 = arith.constant 0 : index
    %53 = vector.load %arg3[%c2_29, %c0_30, %c0_31] : memref<3x32x32xf32, #tpu.memory_space<vmem>>, vector<1x32x32xf32>
    %54 = vector.shape_cast %53 : vector<1x32x32xf32> to vector<32x32xf32>
    %cst_32 = arith.constant dense<0.000000e+00> : vector<32x128xf32>
    %55 = tpu.matmul %54, %45, %cst_32 {dimension_numbers = #tpu.dot_dimension_numbers<[1], [0], [0], [1], [0, 0, 1, 1], [], []>} : vector<32x32xf32>, vector<32x128xf32>, vector<32x128xf32> -> vector<32x128xf32>
    %56 = arith.addf %52, %55 : vector<32x128xf32>
    %57 = vector.broadcast %41 : vector<32x1xf32> to vector<32x128xf32>
    %58 = arith.addf %56, %57 : vector<32x128xf32>
    %cst_33 = arith.constant 0.000000e+00 : f32
    %59 = vector.broadcast %cst_33 : f32 to vector<32x128xf32>
    %60 = arith.maximumf %58, %59 : vector<32x128xf32>
    %c2_34 = arith.constant 2 : index
    %c0_35 = arith.constant 0 : index
    %c0_36 = arith.constant 0 : index
    %61 = vector.load %arg6[%c2_34, %c0_35, %c0_36] : memref<6x32x1xf32, #tpu.memory_space<vmem>>, vector<1x32x1xf32>
    %62 = vector.shape_cast %61 : vector<1x32x1xf32> to vector<32x1xf32>
    %c1_i32_37 = arith.constant 1 : i32
    %63 = tpu.dynamic_rotate %60 by %c1_i32_37 dim 1 : vector<32x128xf32>, i32 -> vector<32x128xf32>
    %64 = arith.mulf %63, %10 : vector<32x128xf32>
    %c127_i32_38 = arith.constant 127 : i32
    %65 = tpu.dynamic_rotate %60 by %c127_i32_38 dim 1 : vector<32x128xf32>, i32 -> vector<32x128xf32>
    %66 = arith.mulf %65, %12 : vector<32x128xf32>
    %c1_39 = arith.constant 1 : index
    %c0_40 = arith.constant 0 : index
    %c0_41 = arith.constant 0 : index
    %67 = vector.load %arg4[%c1_39, %c0_40, %c0_41] : memref<3x32x32xf32, #tpu.memory_space<vmem>>, vector<1x32x32xf32>
    %68 = vector.shape_cast %67 : vector<1x32x32xf32> to vector<32x32xf32>
    %cst_42 = arith.constant dense<0.000000e+00> : vector<32x128xf32>
    %69 = tpu.matmul %68, %60, %cst_42 {dimension_numbers = #tpu.dot_dimension_numbers<[1], [0], [0], [1], [0, 0, 1, 1], [], []>} : vector<32x32xf32>, vector<32x128xf32>, vector<32x128xf32> -> vector<32x128xf32>
    %c0_43 = arith.constant 0 : index
    %c0_44 = arith.constant 0 : index
    %c0_45 = arith.constant 0 : index
    %70 = vector.load %arg4[%c0_43, %c0_44, %c0_45] : memref<3x32x32xf32, #tpu.memory_space<vmem>>, vector<1x32x32xf32>
    %71 = vector.shape_cast %70 : vector<1x32x32xf32> to vector<32x32xf32>
    %cst_46 = arith.constant dense<0.000000e+00> : vector<32x128xf32>
    %72 = tpu.matmul %71, %64, %cst_46 {dimension_numbers = #tpu.dot_dimension_numbers<[1], [0], [0], [1], [0, 0, 1, 1], [], []>} : vector<32x32xf32>, vector<32x128xf32>, vector<32x128xf32> -> vector<32x128xf32>
    %73 = arith.addf %69, %72 : vector<32x128xf32>
    %c2_47 = arith.constant 2 : index
    %c0_48 = arith.constant 0 : index
    %c0_49 = arith.constant 0 : index
    %74 = vector.load %arg4[%c2_47, %c0_48, %c0_49] : memref<3x32x32xf32, #tpu.memory_space<vmem>>, vector<1x32x32xf32>
    %75 = vector.shape_cast %74 : vector<1x32x32xf32> to vector<32x32xf32>
    %cst_50 = arith.constant dense<0.000000e+00> : vector<32x128xf32>
    %76 = tpu.matmul %75, %66, %cst_50 {dimension_numbers = #tpu.dot_dimension_numbers<[1], [0], [0], [1], [0, 0, 1, 1], [], []>} : vector<32x32xf32>, vector<32x128xf32>, vector<32x128xf32> -> vector<32x128xf32>
    %77 = arith.addf %73, %76 : vector<32x128xf32>
    %78 = vector.broadcast %62 : vector<32x1xf32> to vector<32x128xf32>
    %79 = arith.addf %77, %78 : vector<32x128xf32>
    %cst_51 = arith.constant 0.000000e+00 : f32
    %80 = vector.broadcast %cst_51 : f32 to vector<32x128xf32>
    %81 = arith.maximumf %79, %80 : vector<32x128xf32>
    %c3 = arith.constant 3 : index
    %c0_52 = arith.constant 0 : index
    %c0_53 = arith.constant 0 : index
    %82 = vector.load %arg6[%c3, %c0_52, %c0_53] : memref<6x32x1xf32, #tpu.memory_space<vmem>>, vector<1x32x1xf32>
    %83 = vector.shape_cast %82 : vector<1x32x1xf32> to vector<32x1xf32>
    %c1_i32_54 = arith.constant 1 : i32
    %84 = tpu.dynamic_rotate %81 by %c1_i32_54 dim 1 : vector<32x128xf32>, i32 -> vector<32x128xf32>
    %85 = arith.mulf %84, %10 : vector<32x128xf32>
    %c127_i32_55 = arith.constant 127 : i32
    %86 = tpu.dynamic_rotate %81 by %c127_i32_55 dim 1 : vector<32x128xf32>, i32 -> vector<32x128xf32>
    %87 = arith.mulf %86, %12 : vector<32x128xf32>
    %c1_56 = arith.constant 1 : index
    %c0_57 = arith.constant 0 : index
    %c0_58 = arith.constant 0 : index
    %88 = vector.load %arg5[%c1_56, %c0_57, %c0_58] : memref<3x32x32xf32, #tpu.memory_space<vmem>>, vector<1x32x32xf32>
    %89 = vector.shape_cast %88 : vector<1x32x32xf32> to vector<32x32xf32>
    %cst_59 = arith.constant dense<0.000000e+00> : vector<32x128xf32>
    %90 = tpu.matmul %89, %81, %cst_59 {dimension_numbers = #tpu.dot_dimension_numbers<[1], [0], [0], [1], [0, 0, 1, 1], [], []>} : vector<32x32xf32>, vector<32x128xf32>, vector<32x128xf32> -> vector<32x128xf32>
    %c0_60 = arith.constant 0 : index
    %c0_61 = arith.constant 0 : index
    %c0_62 = arith.constant 0 : index
    %91 = vector.load %arg5[%c0_60, %c0_61, %c0_62] : memref<3x32x32xf32, #tpu.memory_space<vmem>>, vector<1x32x32xf32>
    %92 = vector.shape_cast %91 : vector<1x32x32xf32> to vector<32x32xf32>
    %cst_63 = arith.constant dense<0.000000e+00> : vector<32x128xf32>
    %93 = tpu.matmul %92, %85, %cst_63 {dimension_numbers = #tpu.dot_dimension_numbers<[1], [0], [0], [1], [0, 0, 1, 1], [], []>} : vector<32x32xf32>, vector<32x128xf32>, vector<32x128xf32> -> vector<32x128xf32>
    %94 = arith.addf %90, %93 : vector<32x128xf32>
    %c2_64 = arith.constant 2 : index
    %c0_65 = arith.constant 0 : index
    %c0_66 = arith.constant 0 : index
    %95 = vector.load %arg5[%c2_64, %c0_65, %c0_66] : memref<3x32x32xf32, #tpu.memory_space<vmem>>, vector<1x32x32xf32>
    %96 = vector.shape_cast %95 : vector<1x32x32xf32> to vector<32x32xf32>
    %cst_67 = arith.constant dense<0.000000e+00> : vector<32x128xf32>
    %97 = tpu.matmul %96, %87, %cst_67 {dimension_numbers = #tpu.dot_dimension_numbers<[1], [0], [0], [1], [0, 0, 1, 1], [], []>} : vector<32x32xf32>, vector<32x128xf32>, vector<32x128xf32> -> vector<32x128xf32>
    %98 = arith.addf %94, %97 : vector<32x128xf32>
    %99 = vector.broadcast %83 : vector<32x1xf32> to vector<32x128xf32>
    %100 = arith.addf %98, %99 : vector<32x128xf32>
    %cst_68 = arith.constant 0.000000e+00 : f32
    %101 = vector.broadcast %cst_68 : f32 to vector<32x128xf32>
    %102 = arith.maximumf %100, %101 : vector<32x128xf32>
    %c4 = arith.constant 4 : index
    %c0_69 = arith.constant 0 : index
    %c0_70 = arith.constant 0 : index
    %103 = vector.load %arg6[%c4, %c0_69, %c0_70] : memref<6x32x1xf32, #tpu.memory_space<vmem>>, vector<1x32x1xf32>
    %104 = vector.shape_cast %103 : vector<1x32x1xf32> to vector<32x1xf32>
    %105 = vector.broadcast %104 : vector<32x1xf32> to vector<32x128xf32>
    %106 = arith.mulf %102, %105 : vector<32x128xf32>
    %c5 = arith.constant 5 : index
    %c0_71 = arith.constant 0 : index
    %c0_72 = arith.constant 0 : index
    %107 = vector.load %arg6[%c5, %c0_71, %c0_72] : memref<6x32x1xf32, #tpu.memory_space<vmem>>, vector<1x32x1xf32>
    %108 = vector.shape_cast %107 : vector<1x32x1xf32> to vector<32x1xf32>
    %109 = vector.broadcast %108 : vector<32x1xf32> to vector<32x128xf32>
    %110 = arith.addf %106, %109 : vector<32x128xf32>
    %c0_73 = arith.constant 0 : index
    %c0_74 = arith.constant 0 : index
    %c0_75 = arith.constant 0 : index
    %111 = vector.load %arg7[%c0_73, %c0_74, %c0_75] : memref<1x36x128xf32, #tpu.memory_space<vmem>>, vector<1x32x128xf32>
    %112 = vector.shape_cast %111 : vector<1x32x128xf32> to vector<32x128xf32>
    %113 = vector.shape_cast %110 : vector<32x128xf32> to vector<1x32x128xf32>
    tpu.vector_store %arg7[%c0_73, %c0_74, %c0_75], %113 {strides = array<i32>} : memref<1x36x128xf32, #tpu.memory_space<vmem>>, vector<1x32x128xf32>,
    %c0_76 = arith.constant 0 : index
    %c32 = arith.constant 32 : index
    %c0_77 = arith.constant 0 : index
    %114 = vector.load %arg7[%c0_76, %c32, %c0_77] : memref<1x36x128xf32, #tpu.memory_space<vmem>>, vector<1x4x128xf32>
    %115 = vector.shape_cast %114 : vector<1x4x128xf32> to vector<4x128xf32>
    %116 = vector.shape_cast %18 : vector<4x128xf32> to vector<1x4x128xf32>
    tpu.vector_store %arg7[%c0_76, %c32, %c0_77], %116 {strides = array<i32>} : memref<1x36x128xf32, #tpu.memory_space<vmem>>, vector<1x4x128xf32>,
    return
  }
  func.func @transform_0(%arg0: i32) -> (i32, i32, i32) {
    %c0_i32 = arith.constant 0 : i32
    %c0_i32_0 = arith.constant 0 : i32
    %c0_i32_1 = arith.constant 0 : i32
    return %arg0, %c0_i32, %c0_i32_0 : i32, i32, i32
  }
  func.func @transform_1(%arg0: i32) -> (i32, i32, i32) {
    %c0_i32 = arith.constant 0 : i32
    %c0_i32_0 = arith.constant 0 : i32
    %c0_i32_1 = arith.constant 0 : i32
    %c0_i32_2 = arith.constant 0 : i32
    return %c0_i32, %c0_i32_0, %c0_i32_1 : i32, i32, i32
  }
  func.func @transform_2(%arg0: i32) -> (i32, i32, i32) {
    %c0_i32 = arith.constant 0 : i32
    %c0_i32_0 = arith.constant 0 : i32
    %c0_i32_1 = arith.constant 0 : i32
    %c0_i32_2 = arith.constant 0 : i32
    return %c0_i32, %c0_i32_0, %c0_i32_1 : i32, i32, i32
  }
  func.func @transform_3(%arg0: i32) -> (i32, i32, i32) {
    %c0_i32 = arith.constant 0 : i32
    %c0_i32_0 = arith.constant 0 : i32
    %c0_i32_1 = arith.constant 0 : i32
    %c0_i32_2 = arith.constant 0 : i32
    return %c0_i32, %c0_i32_0, %c0_i32_1 : i32, i32, i32
  }
  func.func @transform_4(%arg0: i32) -> (i32, i32, i32) {
    %c0_i32 = arith.constant 0 : i32
    %c0_i32_0 = arith.constant 0 : i32
    %c0_i32_1 = arith.constant 0 : i32
    %c0_i32_2 = arith.constant 0 : i32
    return %c0_i32, %c0_i32_0, %c0_i32_1 : i32, i32, i32
  }
  func.func @transform_5(%arg0: i32) -> (i32, i32, i32) {
    %c0_i32 = arith.constant 0 : i32
    %c0_i32_0 = arith.constant 0 : i32
    %c0_i32_1 = arith.constant 0 : i32
    %c0_i32_2 = arith.constant 0 : i32
    return %c0_i32, %c0_i32_0, %c0_i32_1 : i32, i32, i32
  }
  func.func @transform_6(%arg0: i32) -> (i32, i32, i32) {
    %c0_i32 = arith.constant 0 : i32
    %c0_i32_0 = arith.constant 0 : i32
    %c0_i32_1 = arith.constant 0 : i32
    return %arg0, %c0_i32, %c0_i32_0 : i32, i32, i32
  }
}

</mosaic_0001>

<llo_original>
// kernel: tpu_custom_call.1
$region0: #{tpu_custom_call.1}
  #allocation0 [shape = 'u32[]', space=smem, size = 0x4, offset = 0x4, fixed_abs, tag = 'smem constant byte address 0x4 - core index']
  #allocation1 [shape = 'u32[144,128]{1,0:T(1,128)}', space=vmem, size = 0x12000, scoped, tag = 'internal scratch']
  %s0 = inlined_call_operand.vmem [shape: f32[4,4,128], index: 0, kind: input, shape index: {}]
  %s1 = inlined_call_operand.vmem [shape: f32[3,32,4], index: 1, kind: input, shape index: {}]
  %s2 = inlined_call_operand.vmem [shape: f32[3,32,32], index: 2, kind: input, shape index: {}]
  %s3 = inlined_call_operand.vmem [shape: f32[3,32,32], index: 3, kind: input, shape index: {}]
  %s4 = inlined_call_operand.vmem [shape: f32[3,32,32], index: 4, kind: input, shape index: {}]
  %s5 = inlined_call_operand.vmem [shape: f32[6,32,1], index: 5, kind: input, shape index: {}]
  %s6 = inlined_call_operand.vmem [shape: f32[4,36,128], index: 6, kind: output, shape index: {}]
  %s7 = sld [smem:[#allocation0]]
  $region57: #{tpu_custom_call.1} parent=0
    _
  %s9 = ssub.s32 1, %s7
  %s10 = scalar_select 0, %s9, %s7
  loop: start=0, step=1, limit=6
  $region2: #{tpu_custom_call.1} parent=0 // loop_pre_header
    _
  $region3: #{tpu_custom_call.1} parent=0 // loop_header
    %s12 = sphi 0, %s16
    %p13 = scmp.ge.s32.totalorder %s12, 6
    %s22 = sphi 0, %s24
    %s25 = sphi 0, %s22
    %s26 = sphi 0, %s25
    %s42 = sphi 0, %s26
    %s46 = sphi 0, %s46
    %s48 = sphi 0, %s46
    %s49 = sphi 0, %s48
    %s63 = sphi 0, %s49
    %s67 = sphi 0, %s67
    %s69 = sphi 0, %s67
    %s70 = sphi 0, %s69
    %s84 = sphi 0, %s70
    %s88 = sphi 0, %s88
    %s90 = sphi 0, %s88
    %s91 = sphi 0, %s90
    %s105 = sphi 0, %s91
    %s109 = sphi 0, %s109
    %s111 = sphi 0, %s109
    %s112 = sphi 0, %s111
    %s126 = sphi 0, %s112
    %s130 = sphi 0, %s130
    %s132 = sphi 0, %s130
    %s133 = sphi 0, %s132
    %s147 = sphi 0, %s133
    %s153 = sphi 0, %s155
    %s156 = sphi 0, %s153
    %s157 = sphi 0, %s156
    %s173 = sphi 0, %s157
  $region4: #{tpu_custom_call.1} parent=0 // loop_header_branch
    %15 = sbr.rel (%p13) target = $region8
  $region5: #{tpu_custom_call.1} parent=0 // loop_body
    %s17 = ssub.s32 %s12, 1
    %s18 = ssub.s32 %s12, 2
    %s19 = sadd.s32 %s12, 1
    %s20 = ssub.s32 %s12, %s19
    %p21 = scmp.eq.s32.totalorder %s20, 0
    %s23 = sadd.s32 %s22, 1
    %s24 = scalar_select %p21, %s22, %s23
    %p27 = pneg %p21
    %p28 = scmp.eq.s32.totalorder %s12, 3
    %p29 = por %p27, %p28
    %p30 = scmp.ne.s32.totalorder %s22, %s25
    %p31 = scmp.eq.s32.totalorder %s12, 0
    %p32 = por %p30, %p31
    %p33 = scmp.ne.s32.totalorder %s22, %s25
    %p34 = scmp.eq.s32.totalorder %s17, 3
    %p35 = por %p33, %p34
    %p36 = scmp.ne.s32.totalorder %s25, %s26
    %p37 = scmp.eq.s32.totalorder %s17, 0
    %p38 = por %p36, %p37
    %p39 = scmp.ne.s32.totalorder %s25, %s26
    %p40 = scmp.eq.s32.totalorder %s18, 3
    %p41 = por %p39, %p40
    %p43 = scmp.ne.s32.totalorder %s26, %s42
    %p44 = scmp.eq.s32.totalorder %s18, 0
    %p45 = por %p43, %p44
    %s47 = sadd.s32 %s46, 1
    %p50 = scmp.eq.s32.totalorder %s12, 3
    %p51 = scmp.ne.s32.totalorder %s46, %s48
    %p52 = scmp.eq.s32.totalorder %s12, 0
    %p53 = por %p51, %p52
    %p54 = scmp.ne.s32.totalorder %s46, %s48
    %p55 = scmp.eq.s32.totalorder %s17, 3
    %p56 = por %p54, %p55
    %p57 = scmp.ne.s32.totalorder %s48, %s49
    %p58 = scmp.eq.s32.totalorder %s17, 0
    %p59 = por %p57, %p58
    %p60 = scmp.ne.s32.totalorder %s48, %s49
    %p61 = scmp.eq.s32.totalorder %s18, 3
    %p62 = por %p60, %p61
    %p64 = scmp.ne.s32.totalorder %s49, %s63
    %p65 = scmp.eq.s32.totalorder %s18, 0
    %p66 = por %p64, %p65
    %s68 = sadd.s32 %s67, 1
    %p71 = scmp.eq.s32.totalorder %s12, 3
    %p72 = scmp.ne.s32.totalorder %s67, %s69
    %p73 = scmp.eq.s32.totalorder %s12, 0
    %p74 = por %p72, %p73
    %p75 = scmp.ne.s32.totalorder %s67, %s69
    %p76 = scmp.eq.s32.totalorder %s17, 3
    %p77 = por %p75, %p76
    %p78 = scmp.ne.s32.totalorder %s69, %s70
    %p79 = scmp.eq.s32.totalorder %s17, 0
    %p80 = por %p78, %p79
    %p81 = scmp.ne.s32.totalorder %s69, %s70
    %p82 = scmp.eq.s32.totalorder %s18, 3
    %p83 = por %p81, %p82
    %p85 = scmp.ne.s32.totalorder %s70, %s84
    %p86 = scmp.eq.s32.totalorder %s18, 0
    %p87 = por %p85, %p86
    %s89 = sadd.s32 %s88, 1
    %p92 = scmp.eq.s32.totalorder %s12, 3
    %p93 = scmp.ne.s32.totalorder %s88, %s90
    %p94 = scmp.eq.s32.totalorder %s12, 0
    %p95 = por %p93, %p94
    %p96 = scmp.ne.s32.totalorder %s88, %s90
    %p97 = scmp.eq.s32.totalorder %s17, 3
    %p98 = por %p96, %p97
    %p99 = scmp.ne.s32.totalorder %s90, %s91
    %p100 = scmp.eq.s32.totalorder %s17, 0
    %p101 = por %p99, %p100
    %p102 = scmp.ne.s32.totalorder %s90, %s91
    %p103 = scmp.eq.s32.totalorder %s18, 3
    %p104 = por %p102, %p103
    %p106 = scmp.ne.s32.totalorder %s91, %s105
    %p107 = scmp.eq.s32.totalorder %s18, 0
    %p108 = por %p106, %p107
    %s110 = sadd.s32 %s109, 1
    %p113 = scmp.eq.s32.totalorder %s12, 3
    %p114 = scmp.ne.s32.totalorder %s109, %s111
    %p115 = scmp.eq.s32.totalorder %s12, 0
    %p116 = por %p114, %p115
    %p117 = scmp.ne.s32.totalorder %s109, %s111
    %p118 = scmp.eq.s32.totalorder %s17, 3
    %p119 = por %p117, %p118
    %p120 = scmp.ne.s32.totalorder %s111, %s112
    %p121 = scmp.eq.s32.totalorder %s17, 0
    %p122 = por %p120, %p121
    %p123 = scmp.ne.s32.totalorder %s111, %s112
    %p124 = scmp.eq.s32.totalorder %s18, 3
    %p125 = por %p123, %p124
    %p127 = scmp.ne.s32.totalorder %s112, %s126
    %p128 = scmp.eq.s32.totalorder %s18, 0
    %p129 = por %p127, %p128
    %s131 = sadd.s32 %s130, 1
    %p134 = scmp.eq.s32.totalorder %s12, 3
    %p135 = scmp.ne.s32.totalorder %s130, %s132
    %p136 = scmp.eq.s32.totalorder %s12, 0
    %p137 = por %p135, %p136
    %p138 = scmp.ne.s32.totalorder %s130, %s132
    %p139 = scmp.eq.s32.totalorder %s17, 3
    %p140 = por %p138, %p139
    %p141 = scmp.ne.s32.totalorder %s132, %s133
    %p142 = scmp.eq.s32.totalorder %s17, 0
    %p143 = por %p141, %p142
    %p144 = scmp.ne.s32.totalorder %s132, %s133
    %p145 = scmp.eq.s32.totalorder %s18, 3
    %p146 = por %p144, %p145
    %p148 = scmp.ne.s32.totalorder %s133, %s147
    %p149 = scmp.eq.s32.totalorder %s18, 0
    %p150 = por %p148, %p149
    %s151 = ssub.s32 %s12, %s19
    %p152 = scmp.eq.s32.totalorder %s151, 0
    %s154 = sadd.s32 %s153, 1
    %s155 = scalar_select %p152, %s153, %s154
    %p158 = pneg %p152
    %p159 = scmp.eq.s32.totalorder %s12, 3
    %p160 = por %p158, %p159
    %p161 = scmp.ne.s32.totalorder %s153, %s156
    %p162 = scmp.eq.s32.totalorder %s12, 0
    %p163 = por %p161, %p162
    %p164 = scmp.ne.s32.totalorder %s153, %s156
    %p165 = scmp.eq.s32.totalorder %s17, 3
    %p166 = por %p164, %p165
    %p167 = scmp.ne.s32.totalorder %s156, %s157
    %p168 = scmp.eq.s32.totalorder %s17, 0
    %p169 = por %p167, %p168
    %p170 = scmp.ne.s32.totalorder %s156, %s157
    %p171 = scmp.eq.s32.totalorder %s18, 3
    %p172 = por %p170, %p171
    %p174 = scmp.ne.s32.totalorder %s157, %s173
    %p175 = scmp.eq.s32.totalorder %s18, 0
    %p176 = por %p174, %p175
    %p177 = scmp.le.s32.totalorder 1, %s12
    %p178 = scmp.lt.s32.totalorder %s12, 5
    %p179 = pnand %p177, %p178
    %p180 = pneg %p179
    // Predicated region
    $region9: #{tpu_custom_call.1} parent=5 // pred_check
      _
    $region10: #{tpu_custom_call.1} parent=5 // pred_check_branch
      %182 = sbr.rel (%p179) target = $region12
    $region11: #{tpu_custom_call.1} parent=5 // pred_region
      %s183 = ssub.s32 %s12, 1
      // Predicated region
      $region13: #{tpu_custom_call.1} parent=11 // pred_check
        %p184 = pneg %p59
      $region14: #{tpu_custom_call.1} parent=11 // pred_check_branch
        %186 = sbr.rel (%p184) target = $region16
      $region15: #{tpu_custom_call.1} parent=11 // pred_region
        _
      $region16: #{tpu_custom_call.1} parent=11 // pred_fallthru
        _
      // Predicated region
      $region17: #{tpu_custom_call.1} parent=11 // pred_check
        %p187 = pneg %p80
      $region18: #{tpu_custom_call.1} parent=11 // pred_check_branch
        %189 = sbr.rel (%p187) target = $region20
      $region19: #{tpu_custom_call.1} parent=11 // pred_region
        _
      $region20: #{tpu_custom_call.1} parent=11 // pred_fallthru
        _
      // Predicated region
      $region21: #{tpu_custom_call.1} parent=11 // pred_check
        %p190 = pneg %p101
      $region22: #{tpu_custom_call.1} parent=11 // pred_check_branch
        %192 = sbr.rel (%p190) target = $region24
      $region23: #{tpu_custom_call.1} parent=11 // pred_region
        _
      $region24: #{tpu_custom_call.1} parent=11 // pred_fallthru
        _
      // Predicated region
      $region25: #{tpu_custom_call.1} parent=11 // pred_check
        %p193 = pneg %p122
      $region26: #{tpu_custom_call.1} parent=11 // pred_check_branch
        %195 = sbr.rel (%p193) target = $region28
      $region27: #{tpu_custom_call.1} parent=11 // pred_region
        _
      $region28: #{tpu_custom_call.1} parent=11 // pred_fallthru
        _
      // Predicated region
      $region29: #{tpu_custom_call.1} parent=11 // pred_check
        %p196 = pneg %p143
      $region30: #{tpu_custom_call.1} parent=11 // pred_check_branch
        %198 = sbr.rel (%p196) target = $region32
      $region31: #{tpu_custom_call.1} parent=11 // pred_region
        _
      $region32: #{tpu_custom_call.1} parent=11 // pred_fallthru
        _
    $region12: #{tpu_custom_call.1} parent=5 // pred_fallthru
      _
    %p199 = scmp.lt.s32.totalorder %s12, 4
    // Predicated region
    $region33: #{tpu_custom_call.1} parent=5 // pred_check
      %p200 = pneg %p199
    $region34: #{tpu_custom_call.1} parent=5 // pred_check_branch
      %202 = sbr.rel (%p200) target = $region36
    $region35: #{tpu_custom_call.1} parent=5 // pred_region
      // Predicated region
      $region37: #{tpu_custom_call.1} parent=35 // pred_check
        %p203 = pneg %p32
      $region38: #{tpu_custom_call.1} parent=35 // pred_check_branch
        %205 = sbr.rel (%p203) target = $region40
      $region39: #{tpu_custom_call.1} parent=35 // pred_region
        %p206 = scmp.lt.s32.totalorder %s12, 3
        %s207 = scalar_select %p206, %s12, 3
        %s208 = smul.addr %s207, 4
        %s209 = scalar_lea.vmem %s0, %s208
      $region40: #{tpu_custom_call.1} parent=35 // pred_fallthru
        _
    $region36: #{tpu_custom_call.1} parent=5 // pred_fallthru
      _
    %p210 = scmp.le.s32.totalorder 1, %s12
    %p211 = scmp.lt.s32.totalorder %s12, 5
    %p212 = pnand %p210, %p211
    %p213 = pneg %p212
    // Predicated region
    $region41: #{tpu_custom_call.1} parent=5 // pred_check
      _
    $region42: #{tpu_custom_call.1} parent=5 // pred_check_branch
      %215 = sbr.rel (%p212) target = $region44
    $region43: #{tpu_custom_call.1} parent=5 // pred_region
      %s216 = ssub.s32 %s12, 1
      %p217 = scmp.lt.s32.totalorder %s17, 3
      %s218 = scalar_select %p217, %s17, 3
      %s219 = smul.addr %s218, 4
      %s220 = scalar_lea.vmem %s0, %s219
      %p221 = pneg %p38
      %p222 = pneg %p35
      %p223 = pneg %p59
      %p224 = pneg %p56
      %p225 = pneg %p80
      %p226 = pneg %p77
      %p227 = pneg %p101
      %p228 = pneg %p98
      %p229 = pneg %p122
      %p230 = pneg %p119
      %p231 = pneg %p143
      %p232 = pneg %p140
      %p233 = pneg %p169
      %p234 = pneg %p166
      %p235 = scmp.lt.s32.totalorder %s17, 3
      %s236 = scalar_select %p235, %s17, 3
      %s237 = smul.addr %s236, 5
      %s238 = smul.addr %s237, 8
      %s239 = scalar_lea.vmem %s6, %s238
      %p240 = scmp.lt.s32.totalorder %s17, 3
      %s241 = scalar_select %p240, %s17, 3
      %s242 = smul.addr %s241, 4
      %s243 = scalar_lea.vmem %s0, %s242
      %p244 = scmp.lt.s32.totalorder %s17, 3
      %s245 = scalar_select %p244, %s17, 3
      %s246 = smul.addr %s245, 5
      %s247 = smul.addr %s246, 8
      %s248 = scalar_lea.vmem %s6, %s247
      %v249 = vlaneseq
      %v250 = vand.u32 %v249, 127
      %vm251 = vcmp.ne.s32.totalorder %v250, 0
      %v252 = vsel %vm251, 1, 0
      %v253 = vcvt.s32.f32 %v252
      %vm254 = vcmp.ne.s32.totalorder %v250, 127
      %v255 = vsel %vm254, 1, 0
      %v256 = vcvt.s32.f32 %v255
      %v257 = vld [vmem:[%s243] sm:$0xf]
      %v258 = vld [vmem:[%s5] sm:$0xff]
      %v259 = vld [vmem:[%s5 + $0x8] sm:$0xff]
      %v260 = vld [vmem:[%s5 + $0x10] sm:$0xff]
      %v261 = vld [vmem:[%s5 + $0x18] sm:$0xff]
      %262 = vrot.lane.b32.xlu0 %v257, 1
      %v263 = vpop.permute.xlu0 %262
      %v264 = vmul.f32 %v263, %v253
      %265 = vrot.lane.b32.xlu0 %v257, 127
      %v266 = vpop.permute.xlu0 %265
      %v267 = vmul.f32 %v266, %v256
      %s268 = scalar_lea.vmem %s1, 32
      %v269 = vld [vmem:[%s268] sm:$0xff]
      %v270 = vld [vmem:[%s268 + $0x8] sm:$0xff]
      %v271 = vld [vmem:[%s268 + $0x10] sm:$0xff]
      %v272 = vld [vmem:[%s268 + $0x18] sm:$0xff]
      %v273 = vld [vmem:[%s1] sm:$0xff]
      %v274 = vld [vmem:[%s1 + $0x8] sm:$0xff]
      %v275 = vld [vmem:[%s1 + $0x10] sm:$0xff]
      %v276 = vld [vmem:[%s1 + $0x18] sm:$0xff]
      %vm277 = vcmask 31744
      %v279 = vsel %vm277, %v273, 0
      %v282 = vsel %vm277, %v274, 0
      %v285 = vsel %vm277, %v275, 0
      %v288 = vsel %vm277, %v276, 0
      %vm290 = vcmask 1043456
      %v292 = vsel %vm290, %v264, 0
      %294 = vmatprep.subr.mxu0 0.0
      %295 = vmatpush1.msra.mxu0 %v292
      %296 = vmatprep.subr.mxu0 0.0
      %297 = vmatpush1.msra.mxu0 0.0
      %298 = vmatprep.subr.mxu0 0.0
      %299 = vmatpush1.msra.mxu0 0.0
      %300 = vmatprep.subr.mxu0 0.0
      %301 = vmatpush1.msra.mxu0 0.0
      %302 = vmatprep.subr.mxu0 0.0
      %303 = vmatpush1.msra.mxu0 0.0
      %304 = vmatprep.subr.mxu0 0.0
      %305 = vmatpush1.msra.mxu0 0.0
      %306 = vmatprep.subr.mxu0 0.0
      %307 = vmatpush1.msra.mxu0 0.0
      %308 = vmatprep.subr.mxu0 0.0
      %309 = vmatpush1.msra.mxu0 0.0
      %310 = vmatprep.subr.mxu0 0.0
      %311 = vmatpush1.msra.mxu0 0.0
      %312 = vmatprep.subr.mxu0 0.0
      %313 = vmatpush1.msra.mxu0 0.0
      %314 = vmatprep.subr.mxu0 0.0
      %315 = vmatpush1.msra.mxu0 0.0
      %316 = vmatprep.subr.mxu0 0.0
      %317 = vmatpush1.msra.mxu0 0.0
      %318 = vmatprep.subr.mxu0 0.0
      %319 = vmatpush1.msra.mxu0 0.0
      %320 = vmatprep.subr.mxu0 0.0
      %321 = vmatpush1.msra.mxu0 0.0
      %322 = vmatprep.subr.mxu0 0.0
      %323 = vmatpush1.msra.mxu0 0.0
      %324 = vmatprep.subr.mxu0 0.0
      %325 = vmatpush1.msra.mxu0 0.0
      %326 = vmatprep.subr.mxu0 0.0
      %327 = vmatpush1.msra.mxu0 0.0
      %328 = vmatprep.subr.mxu0 0.0
      %329 = vmatpush1.msra.mxu0 0.0
      %330 = vmatprep.subr.mxu0 0.0
      %331 = vmatpush1.msra.mxu0 0.0
      %332 = vmatprep.subr.mxu0 0.0
      %333 = vmatpush1.msra.mxu0 0.0
      %334 = vmatprep.subr.mxu0 0.0
      %335 = vmatpush1.msra.mxu0 0.0
      %336 = vmatprep.subr.mxu0 0.0
      %337 = vmatpush1.msra.mxu0 0.0
      %338 = vmatprep.subr.mxu0 0.0
      %339 = vmatpush1.msra.mxu0 0.0
      %340 = vmatprep.subr.mxu0 0.0
      %341 = vmatpush1.msra.mxu0 0.0
      %342 = vmatprep.subr.mxu0 0.0
      %343 = vmatpush1.msra.mxu0 0.0
      %344 = vmatprep.subr.mxu0 0.0
      %345 = vmatpush1.msra.mxu0 0.0
      %346 = vmatprep.subr.mxu0 0.0
      %347 = vmatpush1.msra.mxu0 0.0
      %348 = vmatprep.subr.mxu0 0.0
      %349 = vmatpush1.msra.mxu0 0.0
      %350 = vmatprep.subr.mxu0 0.0
      %351 = vmatpush1.msra.mxu0 0.0
      %352 = vmatprep.subr.mxu0 0.0
      %353 = vmatpush1.msra.mxu0 0.0
      %354 = vmatprep.subr.mxu0 0.0
      %355 = vmatpush1.msra.mxu0 0.0
      %356 = vmatprep.subr.mxu0 0.0
      %357 = vmatpush1.msra.mxu0 0.0
      %358 = vmatprep.mubr.f32.mxu0 0.0
      %359 = vmatmul.mubr.f32.gmra.mrb[0].mxu0 %v279
      %v360 = vpop.f32.mrb[0].mxu0
      %v361 = vadd.f32 0.0, %v360
      %v362 = vpop.f32.mrb[0].mxu0
      %363 = vmatprep.mubr.f32.mxu0 0.0
      %364 = vmatmul.mubr.f32.gmra.mrb[0].mxu0 %v282
      %v365 = vpop.f32.mrb[0].mxu0
      %v366 = vadd.f32 0.0, %v365
      %v367 = vpop.f32.mrb[0].mxu0
      %368 = vmatprep.mubr.f32.mxu0 0.0
      %369 = vmatmul.mubr.f32.gmra.mrb[0].mxu0 %v285
      %v370 = vpop.f32.mrb[0].mxu0
      %v371 = vadd.f32 0.0, %v370
      %v372 = vpop.f32.mrb[0].mxu0
      %373 = vmatprep.mubr.f32.mxu0 0.0
      %374 = vmatmul.mubr.f32.gmra.mrb[0].mxu0 %v288
      %v375 = vpop.f32.mrb[0].mxu0
      %v376 = vadd.f32 0.0, %v375
      %v377 = vpop.f32.mrb[0].mxu0
      %378 = vdwg.mxu0
      %v380 = vsel %vm277, %v269, 0
      %v383 = vsel %vm277, %v270, 0
      %v386 = vsel %vm277, %v271, 0
      %v389 = vsel %vm277, %v272, 0
      %v392 = vsel %vm290, %v257, 0
      %394 = vmatprep.subr.mxu0 0.0
      %395 = vmatpush1.msra.mxu0 %v392
      %396 = vmatprep.subr.mxu0 0.0
      %397 = vmatpush1.msra.mxu0 0.0
      %398 = vmatprep.subr.mxu0 0.0
      %399 = vmatpush1.msra.mxu0 0.0
      %400 = vmatprep.subr.mxu0 0.0
      %401 = vmatpush1.msra.mxu0 0.0
      %402 = vmatprep.subr.mxu0 0.0
      %403 = vmatpush1.msra.mxu0 0.0
      %404 = vmatprep.subr.mxu0 0.0
      %405 = vmatpush1.msra.mxu0 0.0
      %406 = vmatprep.subr.mxu0 0.0
      %407 = vmatpush1.msra.mxu0 0.0
      %408 = vmatprep.subr.mxu0 0.0
      %409 = vmatpush1.msra.mxu0 0.0
      %410 = vmatprep.subr.mxu0 0.0
      %411 = vmatpush1.msra.mxu0 0.0
      %412 = vmatprep.subr.mxu0 0.0
      %413 = vmatpush1.msra.mxu0 0.0
      %414 = vmatprep.subr.mxu0 0.0
      %415 = vmatpush1.msra.mxu0 0.0
      %416 = vmatprep.subr.mxu0 0.0
      %417 = vmatpush1.msra.mxu0 0.0
      %418 = vmatprep.subr.mxu0 0.0
      %419 = vmatpush1.msra.mxu0 0.0
      %420 = vmatprep.subr.mxu0 0.0
      %421 = vmatpush1.msra.mxu0 0.0
      %422 = vmatprep.subr.mxu0 0.0
      %423 = vmatpush1.msra.mxu0 0.0
      %424 = vmatprep.subr.mxu0 0.0
      %425 = vmatpush1.msra.mxu0 0.0
      %426 = vmatprep.subr.mxu0 0.0
      %427 = vmatpush1.msra.mxu0 0.0
      %428 = vmatprep.subr.mxu0 0.0
      %429 = vmatpush1.msra.mxu0 0.0
      %430 = vmatprep.subr.mxu0 0.0
      %431 = vmatpush1.msra.mxu0 0.0
      %432 = vmatprep.subr.mxu0 0.0
      %433 = vmatpush1.msra.mxu0 0.0
      %434 = vmatprep.subr.mxu0 0.0
      %435 = vmatpush1.msra.mxu0 0.0
      %436 = vmatprep.subr.mxu0 0.0
      %437 = vmatpush1.msra.mxu0 0.0
      %438 = vmatprep.subr.mxu0 0.0
      %439 = vmatpush1.msra.mxu0 0.0
      %440 = vmatprep.subr.mxu0 0.0
      %441 = vmatpush1.msra.mxu0 0.0
      %442 = vmatprep.subr.mxu0 0.0
      %443 = vmatpush1.msra.mxu0 0.0
      %444 = vmatprep.subr.mxu0 0.0
      %445 = vmatpush1.msra.mxu0 0.0
      %446 = vmatprep.subr.mxu0 0.0
      %447 = vmatpush1.msra.mxu0 0.0
      %448 = vmatprep.subr.mxu0 0.0
      %449 = vmatpush1.msra.mxu0 0.0
      %450 = vmatprep.subr.mxu0 0.0
      %451 = vmatpush1.msra.mxu0 0.0
      %452 = vmatprep.subr.mxu0 0.0
      %453 = vmatpush1.msra.mxu0 0.0
      %454 = vmatprep.subr.mxu0 0.0
      %455 = vmatpush1.msra.mxu0 0.0
      %456 = vmatprep.subr.mxu0 0.0
      %457 = vmatpush1.msra.mxu0 0.0
      %458 = vmatprep.mubr.f32.mxu0 0.0
      %459 = vmatmul.mubr.f32.gmra.mrb[0].mxu0 %v380
      %v460 = vpop.f32.mrb[0].mxu0
      %v461 = vadd.f32 %v361, %v460
      %v462 = vpop.f32.mrb[0].mxu0
      %463 = vmatprep.mubr.f32.mxu0 0.0
      %464 = vmatmul.mubr.f32.gmra.mrb[0].mxu0 %v383
      %v465 = vpop.f32.mrb[0].mxu0
      %v466 = vadd.f32 %v366, %v465
      %v467 = vpop.f32.mrb[0].mxu0
      %468 = vmatprep.mubr.f32.mxu0 0.0
      %469 = vmatmul.mubr.f32.gmra.mrb[0].mxu0 %v386
      %v470 = vpop.f32.mrb[0].mxu0
      %v471 = vadd.f32 %v371, %v470
      %v472 = vpop.f32.mrb[0].mxu0
      %473 = vmatprep.mubr.f32.mxu0 0.0
      %474 = vmatmul.mubr.f32.gmra.mrb[0].mxu0 %v389
      %v475 = vpop.f32.mrb[0].mxu0
      %v476 = vadd.f32 %v376, %v475
      %v477 = vpop.f32.mrb[0].mxu0
      %478 = vdwg.mxu0
      %s479 = scalar_lea.vmem %s1, 64
      %v480 = vld [vmem:[%s479] sm:$0xff]
      %v481 = vld [vmem:[%s479 + $0x8] sm:$0xff]
      %v482 = vld [vmem:[%s479 + $0x10] sm:$0xff]
      %v483 = vld [vmem:[%s479 + $0x18] sm:$0xff]
      %v485 = vsel %vm277, %v480, 0
      %v488 = vsel %vm277, %v481, 0
      %v491 = vsel %vm277, %v482, 0
      %v494 = vsel %vm277, %v483, 0
      %v497 = vsel %vm290, %v267, 0
      %499 = vmatprep.subr.mxu0 0.0
      %500 = vmatpush1.msra.mxu0 %v497
      %501 = vmatprep.subr.mxu0 0.0
      %502 = vmatpush1.msra.mxu0 0.0
      %503 = vmatprep.subr.mxu0 0.0
      %504 = vmatpush1.msra.mxu0 0.0
      %505 = vmatprep.subr.mxu0 0.0
      %506 = vmatpush1.msra.mxu0 0.0
      %507 = vmatprep.subr.mxu0 0.0
      %508 = vmatpush1.msra.mxu0 0.0
      %509 = vmatprep.subr.mxu0 0.0
      %510 = vmatpush1.msra.mxu0 0.0
      %511 = vmatprep.subr.mxu0 0.0
      %512 = vmatpush1.msra.mxu0 0.0
      %513 = vmatprep.subr.mxu0 0.0
      %514 = vmatpush1.msra.mxu0 0.0
      %515 = vmatprep.subr.mxu0 0.0
      %516 = vmatpush1.msra.mxu0 0.0
      %517 = vmatprep.subr.mxu0 0.0
      %518 = vmatpush1.msra.mxu0 0.0
      %519 = vmatprep.subr.mxu0 0.0
      %520 = vmatpush1.msra.mxu0 0.0
      %521 = vmatprep.subr.mxu0 0.0
      %522 = vmatpush1.msra.mxu0 0.0
      %523 = vmatprep.subr.mxu0 0.0
      %524 = vmatpush1.msra.mxu0 0.0
      %525 = vmatprep.subr.mxu0 0.0
      %526 = vmatpush1.msra.mxu0 0.0
      %527 = vmatprep.subr.mxu0 0.0
      %528 = vmatpush1.msra.mxu0 0.0
      %529 = vmatprep.subr.mxu0 0.0
      %530 = vmatpush1.msra.mxu0 0.0
      %531 = vmatprep.subr.mxu0 0.0
      %532 = vmatpush1.msra.mxu0 0.0
      %533 = vmatprep.subr.mxu0 0.0
      %534 = vmatpush1.msra.mxu0 0.0
      %535 = vmatprep.subr.mxu0 0.0
      %536 = vmatpush1.msra.mxu0 0.0
      %537 = vmatprep.subr.mxu0 0.0
      %538 = vmatpush1.msra.mxu0 0.0
      %539 = vmatprep.subr.mxu0 0.0
      %540 = vmatpush1.msra.mxu0 0.0
      %541 = vmatprep.subr.mxu0 0.0
      %542 = vmatpush1.msra.mxu0 0.0
      %543 = vmatprep.subr.mxu0 0.0
      %544 = vmatpush1.msra.mxu0 0.0
      %545 = vmatprep.subr.mxu0 0.0
      %546 = vmatpush1.msra.mxu0 0.0
      %547 = vmatprep.subr.mxu0 0.0
      %548 = vmatpush1.msra.mxu0 0.0
      %549 = vmatprep.subr.mxu0 0.0
      %550 = vmatpush1.msra.mxu0 0.0
      %551 = vmatprep.subr.mxu0 0.0
      %552 = vmatpush1.msra.mxu0 0.0
      %553 = vmatprep.subr.mxu0 0.0
      %554 = vmatpush1.msra.mxu0 0.0
      %555 = vmatprep.subr.mxu0 0.0
      %556 = vmatpush1.msra.mxu0 0.0
      %557 = vmatprep.subr.mxu0 0.0
      %558 = vmatpush1.msra.mxu0 0.0
      %559 = vmatprep.subr.mxu0 0.0
      %560 = vmatpush1.msra.mxu0 0.0
      %561 = vmatprep.subr.mxu0 0.0
      %562 = vmatpush1.msra.mxu0 0.0
      %563 = vmatprep.mubr.f32.mxu0 0.0
      %564 = vmatmul.mubr.f32.gmra.mrb[0].mxu0 %v485
      %v565 = vpop.f32.mrb[0].mxu0
      %v566 = vadd.f32 0.0, %v565
      %v567 = vpop.f32.mrb[0].mxu0
      %568 = vmatprep.mubr.f32.mxu0 0.0
      %569 = vmatmul.mubr.f32.gmra.mrb[0].mxu0 %v488
      %v570 = vpop.f32.mrb[0].mxu0
      %v571 = vadd.f32 0.0, %v570
      %v572 = vpop.f32.mrb[0].mxu0
      %573 = vmatprep.mubr.f32.mxu0 0.0
      %574 = vmatmul.mubr.f32.gmra.mrb[0].mxu0 %v491
      %v575 = vpop.f32.mrb[0].mxu0
      %v576 = vadd.f32 0.0, %v575
      %v577 = vpop.f32.mrb[0].mxu0
      %578 = vmatprep.mubr.f32.mxu0 0.0
      %579 = vmatmul.mubr.f32.gmra.mrb[0].mxu0 %v494
      %v580 = vpop.f32.mrb[0].mxu0
      %v581 = vadd.f32 0.0, %v580
      %v582 = vpop.f32.mrb[0].mxu0
      %583 = vdwg.mxu0
      %v584 = vadd.f32 %v461, %v566
      %v585 = vadd.f32 %v466, %v571
      %v586 = vadd.f32 %v471, %v576
      %v587 = vadd.f32 %v476, %v581
      %589 = vset.pattern.permute.xlu0 0
      %590 = vperm.xlu0 %589, %v258
      %v591 = vpop.permute.xlu0 %590
      %594 = vset.pattern.permute.xlu0 0
      %595 = vperm.xlu0 %594, %v259
      %v596 = vpop.permute.xlu0 %595
      %599 = vset.pattern.permute.xlu0 0
      %600 = vperm.xlu0 %599, %v260
      %v601 = vpop.permute.xlu0 %600
      %604 = vset.pattern.permute.xlu0 0
      %605 = vperm.xlu0 %604, %v261
      %v606 = vpop.permute.xlu0 %605
      %v608 = vadd.f32 %v584, %v591
      %v609 = vadd.f32 %v585, %v596
      %v610 = vadd.f32 %v586, %v601
      %v611 = vadd.f32 %v587, %v606
      %v612 = vmax.f32 %v608, 0.0
      %v613 = vmax.f32 %v609, 0.0
      %v614 = vmax.f32 %v610, 0.0
      %v615 = vmax.f32 %v611, 0.0
      %s616 = scalar_lea.vmem %s5, 32
      %v617 = vld [vmem:[%s616] sm:$0xff]
      %v618 = vld [vmem:[%s616 + $0x8] sm:$0xff]
      %v619 = vld [vmem:[%s616 + $0x10] sm:$0xff]
      %v620 = vld [vmem:[%s616 + $0x18] sm:$0xff]
      %621 = vrot.lane.b32.xlu0 %v612, 1
      %v622 = vpop.permute.xlu0 %621
      %623 = vrot.lane.b32.xlu0 %v613, 1
      %v624 = vpop.permute.xlu0 %623
      %625 = vrot.lane.b32.xlu0 %v614, 1
      %v626 = vpop.permute.xlu0 %625
      %627 = vrot.lane.b32.xlu0 %v615, 1
      %v628 = vpop.permute.xlu0 %627
      %v629 = vmul.f32 %v622, %v253
      %v630 = vmul.f32 %v624, %v253
      %v631 = vmul.f32 %v626, %v253
      %v632 = vmul.f32 %v628, %v253
      %633 = vrot.lane.b32.xlu0 %v612, 127
      %v634 = vpop.permute.xlu0 %633
      %635 = vrot.lane.b32.xlu0 %v613, 127
      %v636 = vpop.permute.xlu0 %635
      %637 = vrot.lane.b32.xlu0 %v614, 127
      %v638 = vpop.permute.xlu0 %637
      %639 = vrot.lane.b32.xlu0 %v615, 127
      %v640 = vpop.permute.xlu0 %639
      %v641 = vmul.f32 %v634, %v256
      %v642 = vmul.f32 %v636, %v256
      %v643 = vmul.f32 %v638, %v256
      %v644 = vmul.f32 %v640, %v256
      %s645 = scalar_lea.vmem %s2, 32
      %v646 = vld [vmem:[%s645] sm:$0xff]
      %v647 = vld [vmem:[%s645 + $0x8] sm:$0xff]
      %v648 = vld [vmem:[%s645 + $0x10] sm:$0xff]
      %v649 = vld [vmem:[%s645 + $0x18] sm:$0xff]
      %v650 = vld [vmem:[%s2] sm:$0xff]
      %v651 = vld [vmem:[%s2 + $0x8] sm:$0xff]
      %v652 = vld [vmem:[%s2 + $0x10] sm:$0xff]
      %v653 = vld [vmem:[%s2 + $0x18] sm:$0xff]
      %vm654 = vcmask 261120
      %v656 = vsel %vm654, %v650, 0
      %v659 = vsel %vm654, %v651, 0
      %v662 = vsel %vm654, %v652, 0
      %v665 = vsel %vm654, %v653, 0
      %667 = vmatprep.subr.mxu0 0.0
      %668 = vmatpush1.msra.mxu0 %v629
      %669 = vmatprep.subr.mxu0 0.0
      %670 = vmatpush1.msra.mxu0 %v630
      %671 = vmatprep.subr.mxu0 0.0
      %672 = vmatpush1.msra.mxu0 %v631
      %673 = vmatprep.subr.mxu0 0.0
      %674 = vmatpush1.msra.mxu0 %v632
      %675 = vmatprep.subr.mxu0 0.0
      %676 = vmatpush1.msra.mxu0 0.0
      %677 = vmatprep.subr.mxu0 0.0
      %678 = vmatpush1.msra.mxu0 0.0
      %679 = vmatprep.subr.mxu0 0.0
      %680 = vmatpush1.msra.mxu0 0.0
      %681 = vmatprep.subr.mxu0 0.0
      %682 = vmatpush1.msra.mxu0 0.0
      %683 = vmatprep.subr.mxu0 0.0
      %684 = vmatpush1.msra.mxu0 0.0
      %685 = vmatprep.subr.mxu0 0.0
      %686 = vmatpush1.msra.mxu0 0.0
      %687 = vmatprep.subr.mxu0 0.0
      %688 = vmatpush1.msra.mxu0 0.0
      %689 = vmatprep.subr.mxu0 0.0
      %690 = vmatpush1.msra.mxu0 0.0
      %691 = vmatprep.subr.mxu0 0.0
      %692 = vmatpush1.msra.mxu0 0.0
      %693 = vmatprep.subr.mxu0 0.0
      %694 = vmatpush1.msra.mxu0 0.0
      %695 = vmatprep.subr.mxu0 0.0
      %696 = vmatpush1.msra.mxu0 0.0
      %697 = vmatprep.subr.mxu0 0.0
      %698 = vmatpush1.msra.mxu0 0.0
      %699 = vmatprep.subr.mxu0 0.0
      %700 = vmatpush1.msra.mxu0 0.0
      %701 = vmatprep.subr.mxu0 0.0
      %702 = vmatpush1.msra.mxu0 0.0
      %703 = vmatprep.subr.mxu0 0.0
      %704 = vmatpush1.msra.mxu0 0.0
      %705 = vmatprep.subr.mxu0 0.0
      %706 = vmatpush1.msra.mxu0 0.0
      %707 = vmatprep.subr.mxu0 0.0
      %708 = vmatpush1.msra.mxu0 0.0
      %709 = vmatprep.subr.mxu0 0.0
      %710 = vmatpush1.msra.mxu0 0.0
      %711 = vmatprep.subr.mxu0 0.0
      %712 = vmatpush1.msra.mxu0 0.0
      %713 = vmatprep.subr.mxu0 0.0
      %714 = vmatpush1.msra.mxu0 0.0
      %715 = vmatprep.subr.mxu0 0.0
      %716 = vmatpush1.msra.mxu0 0.0
      %717 = vmatprep.subr.mxu0 0.0
      %718 = vmatpush1.msra.mxu0 0.0
      %719 = vmatprep.subr.mxu0 0.0
      %720 = vmatpush1.msra.mxu0 0.0
      %721 = vmatprep.subr.mxu0 0.0
      %722 = vmatpush1.msra.mxu0 0.0
      %723 = vmatprep.subr.mxu0 0.0
      %724 = vmatpush1.msra.mxu0 0.0
      %725 = vmatprep.subr.mxu0 0.0
      %726 = vmatpush1.msra.mxu0 0.0
      %727 = vmatprep.subr.mxu0 0.0
      %728 = vmatpush1.msra.mxu0 0.0
      %729 = vmatprep.subr.mxu0 0.0
      %730 = vmatpush1.msra.mxu0 0.0
      %731 = vmatprep.mubr.f32.mxu0 0.0
      %732 = vmatmul.mubr.f32.gmra.mrb[0].mxu0 %v656
      %v733 = vpop.f32.mrb[0].mxu0
      %v734 = vadd.f32 0.0, %v733
      %v735 = vpop.f32.mrb[0].mxu0
      %736 = vmatprep.mubr.f32.mxu0 0.0
      %737 = vmatmul.mubr.f32.gmra.mrb[0].mxu0 %v659
      %v738 = vpop.f32.mrb[0].mxu0
      %v739 = vadd.f32 0.0, %v738
      %v740 = vpop.f32.mrb[0].mxu0
      %741 = vmatprep.mubr.f32.mxu0 0.0
      %742 = vmatmul.mubr.f32.gmra.mrb[0].mxu0 %v662
      %v743 = vpop.f32.mrb[0].mxu0
      %v744 = vadd.f32 0.0, %v743
      %v745 = vpop.f32.mrb[0].mxu0
      %746 = vmatprep.mubr.f32.mxu0 0.0
      %747 = vmatmul.mubr.f32.gmra.mrb[0].mxu0 %v665
      %v748 = vpop.f32.mrb[0].mxu0
      %v749 = vadd.f32 0.0, %v748
      %v750 = vpop.f32.mrb[0].mxu0
      %751 = vdwg.mxu0
      %v753 = vsel %vm654, %v646, 0
      %v756 = vsel %vm654, %v647, 0
      %v759 = vsel %vm654, %v648, 0
      %v762 = vsel %vm654, %v649, 0
      %764 = vmatprep.subr.mxu0 0.0
      %765 = vmatpush1.msra.mxu0 %v612
      %766 = vmatprep.subr.mxu0 0.0
      %767 = vmatpush1.msra.mxu0 %v613
      %768 = vmatprep.subr.mxu0 0.0
      %769 = vmatpush1.msra.mxu0 %v614
      %770 = vmatprep.subr.mxu0 0.0
      %771 = vmatpush1.msra.mxu0 %v615
      %772 = vmatprep.subr.mxu0 0.0
      %773 = vmatpush1.msra.mxu0 0.0
      %774 = vmatprep.subr.mxu0 0.0
      %775 = vmatpush1.msra.mxu0 0.0
      %776 = vmatprep.subr.mxu0 0.0
      %777 = vmatpush1.msra.mxu0 0.0
      %778 = vmatprep.subr.mxu0 0.0
      %779 = vmatpush1.msra.mxu0 0.0
      %780 = vmatprep.subr.mxu0 0.0
      %781 = vmatpush1.msra.mxu0 0.0
      %782 = vmatprep.subr.mxu0 0.0
      %783 = vmatpush1.msra.mxu0 0.0
      %784 = vmatprep.subr.mxu0 0.0
      %785 = vmatpush1.msra.mxu0 0.0
      %786 = vmatprep.subr.mxu0 0.0
      %787 = vmatpush1.msra.mxu0 0.0
      %788 = vmatprep.subr.mxu0 0.0
      %789 = vmatpush1.msra.mxu0 0.0
      %790 = vmatprep.subr.mxu0 0.0
      %791 = vmatpush1.msra.mxu0 0.0
      %792 = vmatprep.subr.mxu0 0.0
      %793 = vmatpush1.msra.mxu0 0.0
      %794 = vmatprep.subr.mxu0 0.0
      %795 = vmatpush1.msra.mxu0 0.0
      %796 = vmatprep.subr.mxu0 0.0
      %797 = vmatpush1.msra.mxu0 0.0
      %798 = vmatprep.subr.mxu0 0.0
      %799 = vmatpush1.msra.mxu0 0.0
      %800 = vmatprep.subr.mxu0 0.0
      %801 = vmatpush1.msra.mxu0 0.0
      %802 = vmatprep.subr.mxu0 0.0
      %803 = vmatpush1.msra.mxu0 0.0
      %804 = vmatprep.subr.mxu0 0.0
      %805 = vmatpush1.msra.mxu0 0.0
      %806 = vmatprep.subr.mxu0 0.0
      %807 = vmatpush1.msra.mxu0 0.0
      %808 = vmatprep.subr.mxu0 0.0
      %809 = vmatpush1.msra.mxu0 0.0
      %810 = vmatprep.subr.mxu0 0.0
      %811 = vmatpush1.msra.mxu0 0.0
      %812 = vmatprep.subr.mxu0 0.0
      %813 = vmatpush1.msra.mxu0 0.0
      %814 = vmatprep.subr.mxu0 0.0
      %815 = vmatpush1.msra.mxu0 0.0
      %816 = vmatprep.subr.mxu0 0.0
      %817 = vmatpush1.msra.mxu0 0.0
      %818 = vmatprep.subr.mxu0 0.0
      %819 = vmatpush1.msra.mxu0 0.0
      %820 = vmatprep.subr.mxu0 0.0
      %821 = vmatpush1.msra.mxu0 0.0
      %822 = vmatprep.subr.mxu0 0.0
      %823 = vmatpush1.msra.mxu0 0.0
      %824 = vmatprep.subr.mxu0 0.0
      %825 = vmatpush1.msra.mxu0 0.0
      %826 = vmatprep.subr.mxu0 0.0
      %827 = vmatpush1.msra.mxu0 0.0
      %828 = vmatprep.mubr.f32.mxu0 0.0
      %829 = vmatmul.mubr.f32.gmra.mrb[0].mxu0 %v753
      %v830 = vpop.f32.mrb[0].mxu0
      %v831 = vadd.f32 %v734, %v830
      %v832 = vpop.f32.mrb[0].mxu0
      %833 = vmatprep.mubr.f32.mxu0 0.0
      %834 = vmatmul.mubr.f32.gmra.mrb[0].mxu0 %v756
      %v835 = vpop.f32.mrb[0].mxu0
      %v836 = vadd.f32 %v739, %v835
      %v837 = vpop.f32.mrb[0].mxu0
      %838 = vmatprep.mubr.f32.mxu0 0.0
      %839 = vmatmul.mubr.f32.gmra.mrb[0].mxu0 %v759
      %v840 = vpop.f32.mrb[0].mxu0
      %v841 = vadd.f32 %v744, %v840
      %v842 = vpop.f32.mrb[0].mxu0
      %843 = vmatprep.mubr.f32.mxu0 0.0
      %844 = vmatmul.mubr.f32.gmra.mrb[0].mxu0 %v762
      %v845 = vpop.f32.mrb[0].mxu0
      %v846 = vadd.f32 %v749, %v845
      %v847 = vpop.f32.mrb[0].mxu0
      %848 = vdwg.mxu0
      %s849 = scalar_lea.vmem %s2, 64
      %v850 = vld [vmem:[%s849] sm:$0xff]
      %v851 = vld [vmem:[%s849 + $0x8] sm:$0xff]
      %v852 = vld [vmem:[%s849 + $0x10] sm:$0xff]
      %v853 = vld [vmem:[%s849 + $0x18] sm:$0xff]
      %v855 = vsel %vm654, %v850, 0
      %v858 = vsel %vm654, %v851, 0
      %v861 = vsel %vm654, %v852, 0
      %v864 = vsel %vm654, %v853, 0
      %866 = vmatprep.subr.mxu0 0.0
      %867 = vmatpush1.msra.mxu0 %v641
      %868 = vmatprep.subr.mxu0 0.0
      %869 = vmatpush1.msra.mxu0 %v642
      %870 = vmatprep.subr.mxu0 0.0
      %871 = vmatpush1.msra.mxu0 %v643
      %872 = vmatprep.subr.mxu0 0.0
      %873 = vmatpush1.msra.mxu0 %v644
      %874 = vmatprep.subr.mxu0 0.0
      %875 = vmatpush1.msra.mxu0 0.0
      %876 = vmatprep.subr.mxu0 0.0
      %877 = vmatpush1.msra.mxu0 0.0
      %878 = vmatprep.subr.mxu0 0.0
      %879 = vmatpush1.msra.mxu0 0.0
      %880 = vmatprep.subr.mxu0 0.0
      %881 = vmatpush1.msra.mxu0 0.0
      %882 = vmatprep.subr.mxu0 0.0
      %883 = vmatpush1.msra.mxu0 0.0
      %884 = vmatprep.subr.mxu0 0.0
      %885 = vmatpush1.msra.mxu0 0.0
      %886 = vmatprep.subr.mxu0 0.0
      %887 = vmatpush1.msra.mxu0 0.0
      %888 = vmatprep.subr.mxu0 0.0
      %889 = vmatpush1.msra.mxu0 0.0
      %890 = vmatprep.subr.mxu0 0.0
      %891 = vmatpush1.msra.mxu0 0.0
      %892 = vmatprep.subr.mxu0 0.0
      %893 = vmatpush1.msra.mxu0 0.0
      %894 = vmatprep.subr.mxu0 0.0
      %895 = vmatpush1.msra.mxu0 0.0
      %896 = vmatprep.subr.mxu0 0.0
      %897 = vmatpush1.msra.mxu0 0.0
      %898 = vmatprep.subr.mxu0 0.0
      %899 = vmatpush1.msra.mxu0 0.0
      %900 = vmatprep.subr.mxu0 0.0
      %901 = vmatpush1.msra.mxu0 0.0
      %902 = vmatprep.subr.mxu0 0.0
      %903 = vmatpush1.msra.mxu0 0.0
      %904 = vmatprep.subr.mxu0 0.0
      %905 = vmatpush1.msra.mxu0 0.0
      %906 = vmatprep.subr.mxu0 0.0
      %907 = vmatpush1.msra.mxu0 0.0
      %908 = vmatprep.subr.mxu0 0.0
      %909 = vmatpush1.msra.mxu0 0.0
      %910 = vmatprep.subr.mxu0 0.0
      %911 = vmatpush1.msra.mxu0 0.0
      %912 = vmatprep.subr.mxu0 0.0
      %913 = vmatpush1.msra.mxu0 0.0
      %914 = vmatprep.subr.mxu0 0.0
      %915 = vmatpush1.msra.mxu0 0.0
      %916 = vmatprep.subr.mxu0 0.0
      %917 = vmatpush1.msra.mxu0 0.0
      %918 = vmatprep.subr.mxu0 0.0
      %919 = vmatpush1.msra.mxu0 0.0
      %920 = vmatprep.subr.mxu0 0.0
      %921 = vmatpush1.msra.mxu0 0.0
      %922 = vmatprep.subr.mxu0 0.0
      %923 = vmatpush1.msra.mxu0 0.0
      %924 = vmatprep.subr.mxu0 0.0
      %925 = vmatpush1.msra.mxu0 0.0
      %926 = vmatprep.subr.mxu0 0.0
      %927 = vmatpush1.msra.mxu0 0.0
      %928 = vmatprep.subr.mxu0 0.0
      %929 = vmatpush1.msra.mxu0 0.0
      %930 = vmatprep.mubr.f32.mxu0 0.0
      %931 = vmatmul.mubr.f32.gmra.mrb[0].mxu0 %v855
      %v932 = vpop.f32.mrb[0].mxu0
      %v933 = vadd.f32 0.0, %v932
      %v934 = vpop.f32.mrb[0].mxu0
      %935 = vmatprep.mubr.f32.mxu0 0.0
      %936 = vmatmul.mubr.f32.gmra.mrb[0].mxu0 %v858
      %v937 = vpop.f32.mrb[0].mxu0
      %v938 = vadd.f32 0.0, %v937
      %v939 = vpop.f32.mrb[0].mxu0
      %940 = vmatprep.mubr.f32.mxu0 0.0
      %941 = vmatmul.mubr.f32.gmra.mrb[0].mxu0 %v861
      %v942 = vpop.f32.mrb[0].mxu0
      %v943 = vadd.f32 0.0, %v942
      %v944 = vpop.f32.mrb[0].mxu0
      %945 = vmatprep.mubr.f32.mxu0 0.0
      %946 = vmatmul.mubr.f32.gmra.mrb[0].mxu0 %v864
      %v947 = vpop.f32.mrb[0].mxu0
      %v948 = vadd.f32 0.0, %v947
      %v949 = vpop.f32.mrb[0].mxu0
      %950 = vdwg.mxu0
      %v951 = vadd.f32 %v831, %v933
      %v952 = vadd.f32 %v836, %v938
      %v953 = vadd.f32 %v841, %v943
      %v954 = vadd.f32 %v846, %v948
      %956 = vset.pattern.permute.xlu0 0
      %957 = vperm.xlu0 %956, %v617
      %v958 = vpop.permute.xlu0 %957
      %961 = vset.pattern.permute.xlu0 0
      %962 = vperm.xlu0 %961, %v618
      %v963 = vpop.permute.xlu0 %962
      %966 = vset.pattern.permute.xlu0 0
      %967 = vperm.xlu0 %966, %v619
      %v968 = vpop.permute.xlu0 %967
      %971 = vset.pattern.permute.xlu0 0
      %972 = vperm.xlu0 %971, %v620
      %v973 = vpop.permute.xlu0 %972
      %v975 = vadd.f32 %v951, %v958
      %v976 = vadd.f32 %v952, %v963
      %v977 = vadd.f32 %v953, %v968
      %v978 = vadd.f32 %v954, %v973
      %v979 = vmax.f32 %v975, 0.0
      %v980 = vmax.f32 %v976, 0.0
      %v981 = vmax.f32 %v977, 0.0
      %v982 = vmax.f32 %v978, 0.0
      %s983 = scalar_lea.vmem %s5, 64
      %v984 = vld [vmem:[%s983] sm:$0xff]
      %v985 = vld [vmem:[%s983 + $0x8] sm:$0xff]
      %v986 = vld [vmem:[%s983 + $0x10] sm:$0xff]
      %v987 = vld [vmem:[%s983 + $0x18] sm:$0xff]
      %988 = vrot.lane.b32.xlu0 %v979, 1
      %v989 = vpop.permute.xlu0 %988
      %990 = vrot.lane.b32.xlu0 %v980, 1
      %v991 = vpop.permute.xlu0 %990
      %992 = vrot.lane.b32.xlu0 %v981, 1
      %v993 = vpop.permute.xlu0 %992
      %994 = vrot.lane.b32.xlu0 %v982, 1
      %v995 = vpop.permute.xlu0 %994
      %v996 = vmul.f32 %v989, %v253
      %v997 = vmul.f32 %v991, %v253
      %v998 = vmul.f32 %v993, %v253
      %v999 = vmul.f32 %v995, %v253
      %1000 = vrot.lane.b32.xlu0 %v979, 127
      %v1001 = vpop.permute.xlu0 %1000
      %1002 = vrot.lane.b32.xlu0 %v980, 127
      %v1003 = vpop.permute.xlu0 %1002
      %1004 = vrot.lane.b32.xlu0 %v981, 127
      %v1005 = vpop.permute.xlu0 %1004
      %1006 = vrot.lane.b32.xlu0 %v982, 127
      %v1007 = vpop.permute.xlu0 %1006
      %v1008 = vmul.f32 %v1001, %v256
      %v1009 = vmul.f32 %v1003, %v256
      %v1010 = vmul.f32 %v1005, %v256
      %v1011 = vmul.f32 %v1007, %v256
      %s1012 = scalar_lea.vmem %s3, 32
      %v1013 = vld [vmem:[%s1012] sm:$0xff]
      %v1014 = vld [vmem:[%s1012 + $0x8] sm:$0xff]
      %v1015 = vld [vmem:[%s1012 + $0x10] sm:$0xff]
      %v1016 = vld [vmem:[%s1012 + $0x18] sm:$0xff]
      %v1017 = vld [vmem:[%s3] sm:$0xff]
      %v1018 = vld [vmem:[%s3 + $0x8] sm:$0xff]
      %v1019 = vld [vmem:[%s3 + $0x10] sm:$0xff]
      %v1020 = vld [vmem:[%s3 + $0x18] sm:$0xff]
      %v1022 = vsel %vm654, %v1017, 0
      %v1025 = vsel %vm654, %v1018, 0
      %v1028 = vsel %vm654, %v1019, 0
      %v1031 = vsel %vm654, %v1020, 0
      %1033 = vmatprep.subr.mxu0 0.0
      %1034 = vmatpush1.msra.mxu0 %v996
      %1035 = vmatprep.subr.mxu0 0.0
      %1036 = vmatpush1.msra.mxu0 %v997
      %1037 = vmatprep.subr.mxu0 0.0
      %1038 = vmatpush1.msra.mxu0 %v998
      %1039 = vmatprep.subr.mxu0 0.0
      %1040 = vmatpush1.msra.mxu0 %v999
      %1041 = vmatprep.subr.mxu0 0.0
      %1042 = vmatpush1.msra.mxu0 0.0
      %1043 = vmatprep.subr.mxu0 0.0
      %1044 = vmatpush1.msra.mxu0 0.0
      %1045 = vmatprep.subr.mxu0 0.0
      %1046 = vmatpush1.msra.mxu0 0.0
      %1047 = vmatprep.subr.mxu0 0.0
      %1048 = vmatpush1.msra.mxu0 0.0
      %1049 = vmatprep.subr.mxu0 0.0
      %1050 = vmatpush1.msra.mxu0 0.0
      %1051 = vmatprep.subr.mxu0 0.0
      %1052 = vmatpush1.msra.mxu0 0.0
      %1053 = vmatprep.subr.mxu0 0.0
      %1054 = vmatpush1.msra.mxu0 0.0
      %1055 = vmatprep.subr.mxu0 0.0
      %1056 = vmatpush1.msra.mxu0 0.0
      %1057 = vmatprep.subr.mxu0 0.0
      %1058 = vmatpush1.msra.mxu0 0.0
      %1059 = vmatprep.subr.mxu0 0.0
      %1060 = vmatpush1.msra.mxu0 0.0
      %1061 = vmatprep.subr.mxu0 0.0
      %1062 = vmatpush1.msra.mxu0 0.0
      %1063 = vmatprep.subr.mxu0 0.0
      %1064 = vmatpush1.msra.mxu0 0.0
      %1065 = vmatprep.subr.mxu0 0.0
      %1066 = vmatpush1.msra.mxu0 0.0
      %1067 = vmatprep.subr.mxu0 0.0
      %1068 = vmatpush1.msra.mxu0 0.0
      %1069 = vmatprep.subr.mxu0 0.0
      %1070 = vmatpush1.msra.mxu0 0.0
      %1071 = vmatprep.subr.mxu0 0.0
      %1072 = vmatpush1.msra.mxu0 0.0
      %1073 = vmatprep.subr.mxu0 0.0
      %1074 = vmatpush1.msra.mxu0 0.0
      %1075 = vmatprep.subr.mxu0 0.0
      %1076 = vmatpush1.msra.mxu0 0.0
      %1077 = vmatprep.subr.mxu0 0.0
      %1078 = vmatpush1.msra.mxu0 0.0
      %1079 = vmatprep.subr.mxu0 0.0
      %1080 = vmatpush1.msra.mxu0 0.0
      %1081 = vmatprep.subr.mxu0 0.0
      %1082 = vmatpush1.msra.mxu0 0.0
      %1083 = vmatprep.subr.mxu0 0.0
      %1084 = vmatpush1.msra.mxu0 0.0
      %1085 = vmatprep.subr.mxu0 0.0
      %1086 = vmatpush1.msra.mxu0 0.0
      %1087 = vmatprep.subr.mxu0 0.0
      %1088 = vmatpush1.msra.mxu0 0.0
      %1089 = vmatprep.subr.mxu0 0.0
      %1090 = vmatpush1.msra.mxu0 0.0
      %1091 = vmatprep.subr.mxu0 0.0
      %1092 = vmatpush1.msra.mxu0 0.0
      %1093 = vmatprep.subr.mxu0 0.0
      %1094 = vmatpush1.msra.mxu0 0.0
      %1095 = vmatprep.subr.mxu0 0.0
      %1096 = vmatpush1.msra.mxu0 0.0
      %1097 = vmatprep.mubr.f32.mxu0 0.0
      %1098 = vmatmul.mubr.f32.gmra.mrb[0].mxu0 %v1022
      %v1099 = vpop.f32.mrb[0].mxu0
      %v1100 = vadd.f32 0.0, %v1099
      %v1101 = vpop.f32.mrb[0].mxu0
      %1102 = vmatprep.mubr.f32.mxu0 0.0
      %1103 = vmatmul.mubr.f32.gmra.mrb[0].mxu0 %v1025
      %v1104 = vpop.f32.mrb[0].mxu0
      %v1105 = vadd.f32 0.0, %v1104
      %v1106 = vpop.f32.mrb[0].mxu0
      %1107 = vmatprep.mubr.f32.mxu0 0.0
      %1108 = vmatmul.mubr.f32.gmra.mrb[0].mxu0 %v1028
      %v1109 = vpop.f32.mrb[0].mxu0
      %v1110 = vadd.f32 0.0, %v1109
      %v1111 = vpop.f32.mrb[0].mxu0
      %1112 = vmatprep.mubr.f32.mxu0 0.0
      %1113 = vmatmul.mubr.f32.gmra.mrb[0].mxu0 %v1031
      %v1114 = vpop.f32.mrb[0].mxu0
      %v1115 = vadd.f32 0.0, %v1114
      %v1116 = vpop.f32.mrb[0].mxu0
      %1117 = vdwg.mxu0
      %v1119 = vsel %vm654, %v1013, 0
      %v1122 = vsel %vm654, %v1014, 0
      %v1125 = vsel %vm654, %v1015, 0
      %v1128 = vsel %vm654, %v1016, 0
      %1130 = vmatprep.subr.mxu0 0.0
      %1131 = vmatpush1.msra.mxu0 %v979
      %1132 = vmatprep.subr.mxu0 0.0
      %1133 = vmatpush1.msra.mxu0 %v980
      %1134 = vmatprep.subr.mxu0 0.0
      %1135 = vmatpush1.msra.mxu0 %v981
      %1136 = vmatprep.subr.mxu0 0.0
      %1137 = vmatpush1.msra.mxu0 %v982
      %1138 = vmatprep.subr.mxu0 0.0
      %1139 = vmatpush1.msra.mxu0 0.0
      %1140 = vmatprep.subr.mxu0 0.0
      %1141 = vmatpush1.msra.mxu0 0.0
      %1142 = vmatprep.subr.mxu0 0.0
      %1143 = vmatpush1.msra.mxu0 0.0
      %1144 = vmatprep.subr.mxu0 0.0
      %1145 = vmatpush1.msra.mxu0 0.0
      %1146 = vmatprep.subr.mxu0 0.0
      %1147 = vmatpush1.msra.mxu0 0.0
      %1148 = vmatprep.subr.mxu0 0.0
      %1149 = vmatpush1.msra.mxu0 0.0
      %1150 = vmatprep.subr.mxu0 0.0
      %1151 = vmatpush1.msra.mxu0 0.0
      %1152 = vmatprep.subr.mxu0 0.0
      %1153 = vmatpush1.msra.mxu0 0.0
      %1154 = vmatprep.subr.mxu0 0.0
      %1155 = vmatpush1.msra.mxu0 0.0
      %1156 = vmatprep.subr.mxu0 0.0
      %1157 = vmatpush1.msra.mxu0 0.0
      %1158 = vmatprep.subr.mxu0 0.0
      %1159 = vmatpush1.msra.mxu0 0.0
      %1160 = vmatprep.subr.mxu0 0.0
      %1161 = vmatpush1.msra.mxu0 0.0
      %1162 = vmatprep.subr.mxu0 0.0
      %1163 = vmatpush1.msra.mxu0 0.0
      %1164 = vmatprep.subr.mxu0 0.0
      %1165 = vmatpush1.msra.mxu0 0.0
      %1166 = vmatprep.subr.mxu0 0.0
      %1167 = vmatpush1.msra.mxu0 0.0
      %1168 = vmatprep.subr.mxu0 0.0
      %1169 = vmatpush1.msra.mxu0 0.0
      %1170 = vmatprep.subr.mxu0 0.0
      %1171 = vmatpush1.msra.mxu0 0.0
      %1172 = vmatprep.subr.mxu0 0.0
      %1173 = vmatpush1.msra.mxu0 0.0
      %1174 = vmatprep.subr.mxu0 0.0
      %1175 = vmatpush1.msra.mxu0 0.0
      %1176 = vmatprep.subr.mxu0 0.0
      %1177 = vmatpush1.msra.mxu0 0.0
      %1178 = vmatprep.subr.mxu0 0.0
      %1179 = vmatpush1.msra.mxu0 0.0
      %1180 = vmatprep.subr.mxu0 0.0
      %1181 = vmatpush1.msra.mxu0 0.0
      %1182 = vmatprep.subr.mxu0 0.0
      %1183 = vmatpush1.msra.mxu0 0.0
      %1184 = vmatprep.subr.mxu0 0.0
      %1185 = vmatpush1.msra.mxu0 0.0
      %1186 = vmatprep.subr.mxu0 0.0
      %1187 = vmatpush1.msra.mxu0 0.0
      %1188 = vmatprep.subr.mxu0 0.0
      %1189 = vmatpush1.msra.mxu0 0.0
      %1190 = vmatprep.subr.mxu0 0.0
      %1191 = vmatpush1.msra.mxu0 0.0
      %1192 = vmatprep.subr.mxu0 0.0
      %1193 = vmatpush1.msra.mxu0 0.0
      %1194 = vmatprep.mubr.f32.mxu0 0.0
      %1195 = vmatmul.mubr.f32.gmra.mrb[0].mxu0 %v1119
      %v1196 = vpop.f32.mrb[0].mxu0
      %v1197 = vadd.f32 %v1100, %v1196
      %v1198 = vpop.f32.mrb[0].mxu0
      %1199 = vmatprep.mubr.f32.mxu0 0.0
      %1200 = vmatmul.mubr.f32.gmra.mrb[0].mxu0 %v1122
      %v1201 = vpop.f32.mrb[0].mxu0
      %v1202 = vadd.f32 %v1105, %v1201
      %v1203 = vpop.f32.mrb[0].mxu0
      %1204 = vmatprep.mubr.f32.mxu0 0.0
      %1205 = vmatmul.mubr.f32.gmra.mrb[0].mxu0 %v1125
      %v1206 = vpop.f32.mrb[0].mxu0
      %v1207 = vadd.f32 %v1110, %v1206
      %v1208 = vpop.f32.mrb[0].mxu0
      %1209 = vmatprep.mubr.f32.mxu0 0.0
      %1210 = vmatmul.mubr.f32.gmra.mrb[0].mxu0 %v1128
      %v1211 = vpop.f32.mrb[0].mxu0
      %v1212 = vadd.f32 %v1115, %v1211
      %v1213 = vpop.f32.mrb[0].mxu0
      %1214 = vdwg.mxu0
      %s1215 = scalar_lea.vmem %s3, 64
      %v1216 = vld [vmem:[%s1215] sm:$0xff]
      %v1217 = vld [vmem:[%s1215 + $0x8] sm:$0xff]
      %v1218 = vld [vmem:[%s1215 + $0x10] sm:$0xff]
      %v1219 = vld [vmem:[%s1215 + $0x18] sm:$0xff]
      %v1221 = vsel %vm654, %v1216, 0
      %v1224 = vsel %vm654, %v1217, 0
      %v1227 = vsel %vm654, %v1218, 0
      %v1230 = vsel %vm654, %v1219, 0
      %1232 = vmatprep.subr.mxu0 0.0
      %1233 = vmatpush1.msra.mxu0 %v1008
      %1234 = vmatprep.subr.mxu0 0.0
      %1235 = vmatpush1.msra.mxu0 %v1009
      %1236 = vmatprep.subr.mxu0 0.0
      %1237 = vmatpush1.msra.mxu0 %v1010
      %1238 = vmatprep.subr.mxu0 0.0
      %1239 = vmatpush1.msra.mxu0 %v1011
      %1240 = vmatprep.subr.mxu0 0.0
      %1241 = vmatpush1.msra.mxu0 0.0
      %1242 = vmatprep.subr.mxu0 0.0
      %1243 = vmatpush1.msra.mxu0 0.0
      %1244 = vmatprep.subr.mxu0 0.0
      %1245 = vmatpush1.msra.mxu0 0.0
      %1246 = vmatprep.subr.mxu0 0.0
      %1247 = vmatpush1.msra.mxu0 0.0
      %1248 = vmatprep.subr.mxu0 0.0
      %1249 = vmatpush1.msra.mxu0 0.0
      %1250 = vmatprep.subr.mxu0 0.0
      %1251 = vmatpush1.msra.mxu0 0.0
      %1252 = vmatprep.subr.mxu0 0.0
      %1253 = vmatpush1.msra.mxu0 0.0
      %1254 = vmatprep.subr.mxu0 0.0
      %1255 = vmatpush1.msra.mxu0 0.0
      %1256 = vmatprep.subr.mxu0 0.0
      %1257 = vmatpush1.msra.mxu0 0.0
      %1258 = vmatprep.subr.mxu0 0.0
      %1259 = vmatpush1.msra.mxu0 0.0
      %1260 = vmatprep.subr.mxu0 0.0
      %1261 = vmatpush1.msra.mxu0 0.0
      %1262 = vmatprep.subr.mxu0 0.0
      %1263 = vmatpush1.msra.mxu0 0.0
      %1264 = vmatprep.subr.mxu0 0.0
      %1265 = vmatpush1.msra.mxu0 0.0
      %1266 = vmatprep.subr.mxu0 0.0
      %1267 = vmatpush1.msra.mxu0 0.0
      %1268 = vmatprep.subr.mxu0 0.0
      %1269 = vmatpush1.msra.mxu0 0.0
      %1270 = vmatprep.subr.mxu0 0.0
      %1271 = vmatpush1.msra.mxu0 0.0
      %1272 = vmatprep.subr.mxu0 0.0
      %1273 = vmatpush1.msra.mxu0 0.0
      %1274 = vmatprep.subr.mxu0 0.0
      %1275 = vmatpush1.msra.mxu0 0.0
      %1276 = vmatprep.subr.mxu0 0.0
      %1277 = vmatpush1.msra.mxu0 0.0
      %1278 = vmatprep.subr.mxu0 0.0
      %1279 = vmatpush1.msra.mxu0 0.0
      %1280 = vmatprep.subr.mxu0 0.0
      %1281 = vmatpush1.msra.mxu0 0.0
      %1282 = vmatprep.subr.mxu0 0.0
      %1283 = vmatpush1.msra.mxu0 0.0
      %1284 = vmatprep.subr.mxu0 0.0
      %1285 = vmatpush1.msra.mxu0 0.0
      %1286 = vmatprep.subr.mxu0 0.0
      %1287 = vmatpush1.msra.mxu0 0.0
      %1288 = vmatprep.subr.mxu0 0.0
      %1289 = vmatpush1.msra.mxu0 0.0
      %1290 = vmatprep.subr.mxu0 0.0
      %1291 = vmatpush1.msra.mxu0 0.0
      %1292 = vmatprep.subr.mxu0 0.0
      %1293 = vmatpush1.msra.mxu0 0.0
      %1294 = vmatprep.subr.mxu0 0.0
      %1295 = vmatpush1.msra.mxu0 0.0
      %1296 = vmatprep.mubr.f32.mxu0 0.0
      %1297 = vmatmul.mubr.f32.gmra.mrb[0].mxu0 %v1221
      %v1298 = vpop.f32.mrb[0].mxu0
      %v1299 = vadd.f32 0.0, %v1298
      %v1300 = vpop.f32.mrb[0].mxu0
      %1301 = vmatprep.mubr.f32.mxu0 0.0
      %1302 = vmatmul.mubr.f32.gmra.mrb[0].mxu0 %v1224
      %v1303 = vpop.f32.mrb[0].mxu0
      %v1304 = vadd.f32 0.0, %v1303
      %v1305 = vpop.f32.mrb[0].mxu0
      %1306 = vmatprep.mubr.f32.mxu0 0.0
      %1307 = vmatmul.mubr.f32.gmra.mrb[0].mxu0 %v1227
      %v1308 = vpop.f32.mrb[0].mxu0
      %v1309 = vadd.f32 0.0, %v1308
      %v1310 = vpop.f32.mrb[0].mxu0
      %1311 = vmatprep.mubr.f32.mxu0 0.0
      %1312 = vmatmul.mubr.f32.gmra.mrb[0].mxu0 %v1230
      %v1313 = vpop.f32.mrb[0].mxu0
      %v1314 = vadd.f32 0.0, %v1313
      %v1315 = vpop.f32.mrb[0].mxu0
      %1316 = vdwg.mxu0
      %v1317 = vadd.f32 %v1197, %v1299
      %v1318 = vadd.f32 %v1202, %v1304
      %v1319 = vadd.f32 %v1207, %v1309
      %v1320 = vadd.f32 %v1212, %v1314
      %1322 = vset.pattern.permute.xlu0 0
      %1323 = vperm.xlu0 %1322, %v984
      %v1324 = vpop.permute.xlu0 %1323
      %1327 = vset.pattern.permute.xlu0 0
      %1328 = vperm.xlu0 %1327, %v985
      %v1329 = vpop.permute.xlu0 %1328
      %1332 = vset.pattern.permute.xlu0 0
      %1333 = vperm.xlu0 %1332, %v986
      %v1334 = vpop.permute.xlu0 %1333
      %1337 = vset.pattern.permute.xlu0 0
      %1338 = vperm.xlu0 %1337, %v987
      %v1339 = vpop.permute.xlu0 %1338
      %v1341 = vadd.f32 %v1317, %v1324
      %v1342 = vadd.f32 %v1318, %v1329
      %v1343 = vadd.f32 %v1319, %v1334
      %v1344 = vadd.f32 %v1320, %v1339
      %v1345 = vmax.f32 %v1341, 0.0
      %v1346 = vmax.f32 %v1342, 0.0
      %v1347 = vmax.f32 %v1343, 0.0
      %v1348 = vmax.f32 %v1344, 0.0
      %s1349 = scalar_lea.vmem %s5, 96
      %v1350 = vld [vmem:[%s1349] sm:$0xff]
      %v1351 = vld [vmem:[%s1349 + $0x8] sm:$0xff]
      %v1352 = vld [vmem:[%s1349 + $0x10] sm:$0xff]
      %v1353 = vld [vmem:[%s1349 + $0x18] sm:$0xff]
      %1354 = vrot.lane.b32.xlu0 %v1345, 1
      %v1355 = vpop.permute.xlu0 %1354
      %1356 = vrot.lane.b32.xlu0 %v1346, 1
      %v1357 = vpop.permute.xlu0 %1356
      %1358 = vrot.lane.b32.xlu0 %v1347, 1
      %v1359 = vpop.permute.xlu0 %1358
      %1360 = vrot.lane.b32.xlu0 %v1348, 1
      %v1361 = vpop.permute.xlu0 %1360
      %v1362 = vmul.f32 %v1355, %v253
      %v1363 = vmul.f32 %v1357, %v253
      %v1364 = vmul.f32 %v1359, %v253
      %v1365 = vmul.f32 %v1361, %v253
      %1366 = vrot.lane.b32.xlu0 %v1345, 127
      %v1367 = vpop.permute.xlu0 %1366
      %1368 = vrot.lane.b32.xlu0 %v1346, 127
      %v1369 = vpop.permute.xlu0 %1368
      %1370 = vrot.lane.b32.xlu0 %v1347, 127
      %v1371 = vpop.permute.xlu0 %1370
      %1372 = vrot.lane.b32.xlu0 %v1348, 127
      %v1373 = vpop.permute.xlu0 %1372
      %v1374 = vmul.f32 %v1367, %v256
      %v1375 = vmul.f32 %v1369, %v256
      %v1376 = vmul.f32 %v1371, %v256
      %v1377 = vmul.f32 %v1373, %v256
      %s1378 = scalar_lea.vmem %s4, 32
      %v1379 = vld [vmem:[%s1378] sm:$0xff]
      %v1380 = vld [vmem:[%s1378 + $0x8] sm:$0xff]
      %v1381 = vld [vmem:[%s1378 + $0x10] sm:$0xff]
      %v1382 = vld [vmem:[%s1378 + $0x18] sm:$0xff]
      %v1383 = vld [vmem:[%s4] sm:$0xff]
      %v1384 = vld [vmem:[%s4 + $0x8] sm:$0xff]
      %v1385 = vld [vmem:[%s4 + $0x10] sm:$0xff]
      %v1386 = vld [vmem:[%s4 + $0x18] sm:$0xff]
      %v1388 = vsel %vm654, %v1383, 0
      %v1391 = vsel %vm654, %v1384, 0
      %v1394 = vsel %vm654, %v1385, 0
      %v1397 = vsel %vm654, %v1386, 0
      %1399 = vmatprep.subr.mxu0 0.0
      %1400 = vmatpush1.msra.mxu0 %v1362
      %1401 = vmatprep.subr.mxu0 0.0
      %1402 = vmatpush1.msra.mxu0 %v1363
      %1403 = vmatprep.subr.mxu0 0.0
      %1404 = vmatpush1.msra.mxu0 %v1364
      %1405 = vmatprep.subr.mxu0 0.0
      %1406 = vmatpush1.msra.mxu0 %v1365
      %1407 = vmatprep.subr.mxu0 0.0
      %1408 = vmatpush1.msra.mxu0 0.0
      %1409 = vmatprep.subr.mxu0 0.0
      %1410 = vmatpush1.msra.mxu0 0.0
      %1411 = vmatprep.subr.mxu0 0.0
      %1412 = vmatpush1.msra.mxu0 0.0
      %1413 = vmatprep.subr.mxu0 0.0
      %1414 = vmatpush1.msra.mxu0 0.0
      %1415 = vmatprep.subr.mxu0 0.0
      %1416 = vmatpush1.msra.mxu0 0.0
      %1417 = vmatprep.subr.mxu0 0.0
      %1418 = vmatpush1.msra.mxu0 0.0
      %1419 = vmatprep.subr.mxu0 0.0
      %1420 = vmatpush1.msra.mxu0 0.0
      %1421 = vmatprep.subr.mxu0 0.0
      %1422 = vmatpush1.msra.mxu0 0.0
      %1423 = vmatprep.subr.mxu0 0.0
      %1424 = vmatpush1.msra.mxu0 0.0
      %1425 = vmatprep.subr.mxu0 0.0
      %1426 = vmatpush1.msra.mxu0 0.0
      %1427 = vmatprep.subr.mxu0 0.0
      %1428 = vmatpush1.msra.mxu0 0.0
      %1429 = vmatprep.subr.mxu0 0.0
      %1430 = vmatpush1.msra.mxu0 0.0
      %1431 = vmatprep.subr.mxu0 0.0
      %1432 = vmatpush1.msra.mxu0 0.0
      %1433 = vmatprep.subr.mxu0 0.0
      %1434 = vmatpush1.msra.mxu0 0.0
      %1435 = vmatprep.subr.mxu0 0.0
      %1436 = vmatpush1.msra.mxu0 0.0
      %1437 = vmatprep.subr.mxu0 0.0
      %1438 = vmatpush1.msra.mxu0 0.0
      %1439 = vmatprep.subr.mxu0 0.0
      %1440 = vmatpush1.msra.mxu0 0.0
      %1441 = vmatprep.subr.mxu0 0.0
      %1442 = vmatpush1.msra.mxu0 0.0
      %1443 = vmatprep.subr.mxu0 0.0
      %1444 = vmatpush1.msra.mxu0 0.0
      %1445 = vmatprep.subr.mxu0 0.0
      %1446 = vmatpush1.msra.mxu0 0.0
      %1447 = vmatprep.subr.mxu0 0.0
      %1448 = vmatpush1.msra.mxu0 0.0
      %1449 = vmatprep.subr.mxu0 0.0
      %1450 = vmatpush1.msra.mxu0 0.0
      %1451 = vmatprep.subr.mxu0 0.0
      %1452 = vmatpush1.msra.mxu0 0.0
      %1453 = vmatprep.subr.mxu0 0.0
      %1454 = vmatpush1.msra.mxu0 0.0
      %1455 = vmatprep.subr.mxu0 0.0
      %1456 = vmatpush1.msra.mxu0 0.0
      %1457 = vmatprep.subr.mxu0 0.0
      %1458 = vmatpush1.msra.mxu0 0.0
      %1459 = vmatprep.subr.mxu0 0.0
      %1460 = vmatpush1.msra.mxu0 0.0
      %1461 = vmatprep.subr.mxu0 0.0
      %1462 = vmatpush1.msra.mxu0 0.0
      %1463 = vmatprep.mubr.f32.mxu0 0.0
      %1464 = vmatmul.mubr.f32.gmra.mrb[0].mxu0 %v1388
      %v1465 = vpop.f32.mrb[0].mxu0
      %v1466 = vadd.f32 0.0, %v1465
      %v1467 = vpop.f32.mrb[0].mxu0
      %1468 = vmatprep.mubr.f32.mxu0 0.0
      %1469 = vmatmul.mubr.f32.gmra.mrb[0].mxu0 %v1391
      %v1470 = vpop.f32.mrb[0].mxu0
      %v1471 = vadd.f32 0.0, %v1470
      %v1472 = vpop.f32.mrb[0].mxu0
      %1473 = vmatprep.mubr.f32.mxu0 0.0
      %1474 = vmatmul.mubr.f32.gmra.mrb[0].mxu0 %v1394
      %v1475 = vpop.f32.mrb[0].mxu0
      %v1476 = vadd.f32 0.0, %v1475
      %v1477 = vpop.f32.mrb[0].mxu0
      %1478 = vmatprep.mubr.f32.mxu0 0.0
      %1479 = vmatmul.mubr.f32.gmra.mrb[0].mxu0 %v1397
      %v1480 = vpop.f32.mrb[0].mxu0
      %v1481 = vadd.f32 0.0, %v1480
      %v1482 = vpop.f32.mrb[0].mxu0
      %1483 = vdwg.mxu0
      %v1485 = vsel %vm654, %v1379, 0
      %v1488 = vsel %vm654, %v1380, 0
      %v1491 = vsel %vm654, %v1381, 0
      %v1494 = vsel %vm654, %v1382, 0
      %1496 = vmatprep.subr.mxu0 0.0
      %1497 = vmatpush1.msra.mxu0 %v1345
      %1498 = vmatprep.subr.mxu0 0.0
      %1499 = vmatpush1.msra.mxu0 %v1346
      %1500 = vmatprep.subr.mxu0 0.0
      %1501 = vmatpush1.msra.mxu0 %v1347
      %1502 = vmatprep.subr.mxu0 0.0
      %1503 = vmatpush1.msra.mxu0 %v1348
      %1504 = vmatprep.subr.mxu0 0.0
      %1505 = vmatpush1.msra.mxu0 0.0
      %1506 = vmatprep.subr.mxu0 0.0
      %1507 = vmatpush1.msra.mxu0 0.0
      %1508 = vmatprep.subr.mxu0 0.0
      %1509 = vmatpush1.msra.mxu0 0.0
      %1510 = vmatprep.subr.mxu0 0.0
      %1511 = vmatpush1.msra.mxu0 0.0
      %1512 = vmatprep.subr.mxu0 0.0
      %1513 = vmatpush1.msra.mxu0 0.0
      %1514 = vmatprep.subr.mxu0 0.0
      %1515 = vmatpush1.msra.mxu0 0.0
      %1516 = vmatprep.subr.mxu0 0.0
      %1517 = vmatpush1.msra.mxu0 0.0
      %1518 = vmatprep.subr.mxu0 0.0
      %1519 = vmatpush1.msra.mxu0 0.0
      %1520 = vmatprep.subr.mxu0 0.0
      %1521 = vmatpush1.msra.mxu0 0.0
      %1522 = vmatprep.subr.mxu0 0.0
      %1523 = vmatpush1.msra.mxu0 0.0
      %1524 = vmatprep.subr.mxu0 0.0
      %1525 = vmatpush1.msra.mxu0 0.0
      %1526 = vmatprep.subr.mxu0 0.0
      %1527 = vmatpush1.msra.mxu0 0.0
      %1528 = vmatprep.subr.mxu0 0.0
      %1529 = vmatpush1.msra.mxu0 0.0
      %1530 = vmatprep.subr.mxu0 0.0
      %1531 = vmatpush1.msra.mxu0 0.0
      %1532 = vmatprep.subr.mxu0 0.0
      %1533 = vmatpush1.msra.mxu0 0.0
      %1534 = vmatprep.subr.mxu0 0.0
      %1535 = vmatpush1.msra.mxu0 0.0
      %1536 = vmatprep.subr.mxu0 0.0
      %1537 = vmatpush1.msra.mxu0 0.0
      %1538 = vmatprep.subr.mxu0 0.0
      %1539 = vmatpush1.msra.mxu0 0.0
      %1540 = vmatprep.subr.mxu0 0.0
      %1541 = vmatpush1.msra.mxu0 0.0
      %1542 = vmatprep.subr.mxu0 0.0
      %1543 = vmatpush1.msra.mxu0 0.0
      %1544 = vmatprep.subr.mxu0 0.0
      %1545 = vmatpush1.msra.mxu0 0.0
      %1546 = vmatprep.subr.mxu0 0.0
      %1547 = vmatpush1.msra.mxu0 0.0
      %1548 = vmatprep.subr.mxu0 0.0
      %1549 = vmatpush1.msra.mxu0 0.0
      %1550 = vmatprep.subr.mxu0 0.0
      %1551 = vmatpush1.msra.mxu0 0.0
      %1552 = vmatprep.subr.mxu0 0.0
      %1553 = vmatpush1.msra.mxu0 0.0
      %1554 = vmatprep.subr.mxu0 0.0
      %1555 = vmatpush1.msra.mxu0 0.0
      %1556 = vmatprep.subr.mxu0 0.0
      %1557 = vmatpush1.msra.mxu0 0.0
      %1558 = vmatprep.subr.mxu0 0.0
      %1559 = vmatpush1.msra.mxu0 0.0
      %1560 = vmatprep.mubr.f32.mxu0 0.0
      %1561 = vmatmul.mubr.f32.gmra.mrb[0].mxu0 %v1485
      %v1562 = vpop.f32.mrb[0].mxu0
      %v1563 = vadd.f32 %v1466, %v1562
      %v1564 = vpop.f32.mrb[0].mxu0
      %1565 = vmatprep.mubr.f32.mxu0 0.0
      %1566 = vmatmul.mubr.f32.gmra.mrb[0].mxu0 %v1488
      %v1567 = vpop.f32.mrb[0].mxu0
      %v1568 = vadd.f32 %v1471, %v1567
      %v1569 = vpop.f32.mrb[0].mxu0
      %1570 = vmatprep.mubr.f32.mxu0 0.0
      %1571 = vmatmul.mubr.f32.gmra.mrb[0].mxu0 %v1491
      %v1572 = vpop.f32.mrb[0].mxu0
      %v1573 = vadd.f32 %v1476, %v1572
      %v1574 = vpop.f32.mrb[0].mxu0
      %1575 = vmatprep.mubr.f32.mxu0 0.0
      %1576 = vmatmul.mubr.f32.gmra.mrb[0].mxu0 %v1494
      %v1577 = vpop.f32.mrb[0].mxu0
      %v1578 = vadd.f32 %v1481, %v1577
      %v1579 = vpop.f32.mrb[0].mxu0
      %1580 = vdwg.mxu0
      %s1581 = scalar_lea.vmem %s4, 64
      %v1582 = vld [vmem:[%s1581] sm:$0xff]
      %v1583 = vld [vmem:[%s1581 + $0x8] sm:$0xff]
      %v1584 = vld [vmem:[%s1581 + $0x10] sm:$0xff]
      %v1585 = vld [vmem:[%s1581 + $0x18] sm:$0xff]
      %v1587 = vsel %vm654, %v1582, 0
      %v1590 = vsel %vm654, %v1583, 0
      %v1593 = vsel %vm654, %v1584, 0
      %v1596 = vsel %vm654, %v1585, 0
      %1598 = vmatprep.subr.mxu0 0.0
      %1599 = vmatpush1.msra.mxu0 %v1374
      %1600 = vmatprep.subr.mxu0 0.0
      %1601 = vmatpush1.msra.mxu0 %v1375
      %1602 = vmatprep.subr.mxu0 0.0
      %1603 = vmatpush1.msra.mxu0 %v1376
      %1604 = vmatprep.subr.mxu0 0.0
      %1605 = vmatpush1.msra.mxu0 %v1377
      %1606 = vmatprep.subr.mxu0 0.0
      %1607 = vmatpush1.msra.mxu0 0.0
      %1608 = vmatprep.subr.mxu0 0.0
      %1609 = vmatpush1.msra.mxu0 0.0
      %1610 = vmatprep.subr.mxu0 0.0
      %1611 = vmatpush1.msra.mxu0 0.0
      %1612 = vmatprep.subr.mxu0 0.0
      %1613 = vmatpush1.msra.mxu0 0.0
      %1614 = vmatprep.subr.mxu0 0.0
      %1615 = vmatpush1.msra.mxu0 0.0
      %1616 = vmatprep.subr.mxu0 0.0
      %1617 = vmatpush1.msra.mxu0 0.0
      %1618 = vmatprep.subr.mxu0 0.0
      %1619 = vmatpush1.msra.mxu0 0.0
      %1620 = vmatprep.subr.mxu0 0.0
      %1621 = vmatpush1.msra.mxu0 0.0
      %1622 = vmatprep.subr.mxu0 0.0
      %1623 = vmatpush1.msra.mxu0 0.0
      %1624 = vmatprep.subr.mxu0 0.0
      %1625 = vmatpush1.msra.mxu0 0.0
      %1626 = vmatprep.subr.mxu0 0.0
      %1627 = vmatpush1.msra.mxu0 0.0
      %1628 = vmatprep.subr.mxu0 0.0
      %1629 = vmatpush1.msra.mxu0 0.0
      %1630 = vmatprep.subr.mxu0 0.0
      %1631 = vmatpush1.msra.mxu0 0.0
      %1632 = vmatprep.subr.mxu0 0.0
      %1633 = vmatpush1.msra.mxu0 0.0
      %1634 = vmatprep.subr.mxu0 0.0
      %1635 = vmatpush1.msra.mxu0 0.0
      %1636 = vmatprep.subr.mxu0 0.0
      %1637 = vmatpush1.msra.mxu0 0.0
      %1638 = vmatprep.subr.mxu0 0.0
      %1639 = vmatpush1.msra.mxu0 0.0
      %1640 = vmatprep.subr.mxu0 0.0
      %1641 = vmatpush1.msra.mxu0 0.0
      %1642 = vmatprep.subr.mxu0 0.0
      %1643 = vmatpush1.msra.mxu0 0.0
      %1644 = vmatprep.subr.mxu0 0.0
      %1645 = vmatpush1.msra.mxu0 0.0
      %1646 = vmatprep.subr.mxu0 0.0
      %1647 = vmatpush1.msra.mxu0 0.0
      %1648 = vmatprep.subr.mxu0 0.0
      %1649 = vmatpush1.msra.mxu0 0.0
      %1650 = vmatprep.subr.mxu0 0.0
      %1651 = vmatpush1.msra.mxu0 0.0
      %1652 = vmatprep.subr.mxu0 0.0
      %1653 = vmatpush1.msra.mxu0 0.0
      %1654 = vmatprep.subr.mxu0 0.0
      %1655 = vmatpush1.msra.mxu0 0.0
      %1656 = vmatprep.subr.mxu0 0.0
      %1657 = vmatpush1.msra.mxu0 0.0
      %1658 = vmatprep.subr.mxu0 0.0
      %1659 = vmatpush1.msra.mxu0 0.0
      %1660 = vmatprep.subr.mxu0 0.0
      %1661 = vmatpush1.msra.mxu0 0.0
      %1662 = vmatprep.mubr.f32.mxu0 0.0
      %1663 = vmatmul.mubr.f32.gmra.mrb[0].mxu0 %v1587
      %v1664 = vpop.f32.mrb[0].mxu0
      %v1665 = vadd.f32 0.0, %v1664
      %v1666 = vpop.f32.mrb[0].mxu0
      %1667 = vmatprep.mubr.f32.mxu0 0.0
      %1668 = vmatmul.mubr.f32.gmra.mrb[0].mxu0 %v1590
      %v1669 = vpop.f32.mrb[0].mxu0
      %v1670 = vadd.f32 0.0, %v1669
      %v1671 = vpop.f32.mrb[0].mxu0
      %1672 = vmatprep.mubr.f32.mxu0 0.0
      %1673 = vmatmul.mubr.f32.gmra.mrb[0].mxu0 %v1593
      %v1674 = vpop.f32.mrb[0].mxu0
      %v1675 = vadd.f32 0.0, %v1674
      %v1676 = vpop.f32.mrb[0].mxu0
      %1677 = vmatprep.mubr.f32.mxu0 0.0
      %1678 = vmatmul.mubr.f32.gmra.mrb[0].mxu0 %v1596
      %v1679 = vpop.f32.mrb[0].mxu0
      %v1680 = vadd.f32 0.0, %v1679
      %v1681 = vpop.f32.mrb[0].mxu0
      %1682 = vdwg.mxu0
      %v1683 = vadd.f32 %v1563, %v1665
      %v1684 = vadd.f32 %v1568, %v1670
      %v1685 = vadd.f32 %v1573, %v1675
      %v1686 = vadd.f32 %v1578, %v1680
      %1688 = vset.pattern.permute.xlu0 0
      %1689 = vperm.xlu0 %1688, %v1350
      %v1690 = vpop.permute.xlu0 %1689
      %1693 = vset.pattern.permute.xlu0 0
      %1694 = vperm.xlu0 %1693, %v1351
      %v1695 = vpop.permute.xlu0 %1694
      %1698 = vset.pattern.permute.xlu0 0
      %1699 = vperm.xlu0 %1698, %v1352
      %v1700 = vpop.permute.xlu0 %1699
      %1703 = vset.pattern.permute.xlu0 0
      %1704 = vperm.xlu0 %1703, %v1353
      %v1705 = vpop.permute.xlu0 %1704
      %v1707 = vadd.f32 %v1683, %v1690
      %v1708 = vadd.f32 %v1684, %v1695
      %v1709 = vadd.f32 %v1685, %v1700
      %v1710 = vadd.f32 %v1686, %v1705
      %v1711 = vmax.f32 %v1707, 0.0
      %v1712 = vmax.f32 %v1708, 0.0
      %v1713 = vmax.f32 %v1709, 0.0
      %v1714 = vmax.f32 %v1710, 0.0
      %s1715 = scalar_lea.vmem %s5, 128
      %v1716 = vld [vmem:[%s1715] sm:$0xff]
      %v1717 = vld [vmem:[%s1715 + $0x8] sm:$0xff]
      %v1718 = vld [vmem:[%s1715 + $0x10] sm:$0xff]
      %v1719 = vld [vmem:[%s1715 + $0x18] sm:$0xff]
      %1721 = vset.pattern.permute.xlu0 0
      %1722 = vperm.xlu0 %1721, %v1716
      %v1723 = vpop.permute.xlu0 %1722
      %1726 = vset.pattern.permute.xlu0 0
      %1727 = vperm.xlu0 %1726, %v1717
      %v1728 = vpop.permute.xlu0 %1727
      %1731 = vset.pattern.permute.xlu0 0
      %1732 = vperm.xlu0 %1731, %v1718
      %v1733 = vpop.permute.xlu0 %1732
      %1736 = vset.pattern.permute.xlu0 0
      %1737 = vperm.xlu0 %1736, %v1719
      %v1738 = vpop.permute.xlu0 %1737
      %v1740 = vmul.f32 %v1711, %v1723
      %v1741 = vmul.f32 %v1712, %v1728
      %v1742 = vmul.f32 %v1713, %v1733
      %v1743 = vmul.f32 %v1714, %v1738
      %s1744 = scalar_lea.vmem %s5, 160
      %v1745 = vld [vmem:[%s1744] sm:$0xff]
      %v1746 = vld [vmem:[%s1744 + $0x8] sm:$0xff]
      %v1747 = vld [vmem:[%s1744 + $0x10] sm:$0xff]
      %v1748 = vld [vmem:[%s1744 + $0x18] sm:$0xff]
      %1750 = vset.pattern.permute.xlu0 0
      %1751 = vperm.xlu0 %1750, %v1745
      %v1752 = vpop.permute.xlu0 %1751
      %1755 = vset.pattern.permute.xlu0 0
      %1756 = vperm.xlu0 %1755, %v1746
      %v1757 = vpop.permute.xlu0 %1756
      %1760 = vset.pattern.permute.xlu0 0
      %1761 = vperm.xlu0 %1760, %v1747
      %v1762 = vpop.permute.xlu0 %1761
      %1765 = vset.pattern.permute.xlu0 0
      %1766 = vperm.xlu0 %1765, %v1748
      %v1767 = vpop.permute.xlu0 %1766
      %v1769 = vadd.f32 %v1740, %v1752
      %v1770 = vadd.f32 %v1741, %v1757
      %v1771 = vadd.f32 %v1742, %v1762
      %v1772 = vadd.f32 %v1743, %v1767
      %1773 = vst [vmem:[%s248] sm:$0xff] %v1769
      %1774 = vst [vmem:[%s248 + $0x8] sm:$0xff] %v1770
      %1775 = vst [vmem:[%s248 + $0x10] sm:$0xff] %v1771
      %1776 = vst [vmem:[%s248 + $0x18] sm:$0xff] %v1772
      %1777 = vst [vmem:[%s248 + $0x20] sm:$0xf] %v257
      %p1778 = scmp.lt.s32.totalorder %s17, 3
      %s1779 = scalar_select %p1778, %s17, 3
      %s1780 = smul.addr %s1779, 5
      %s1781 = smul.addr %s1780, 8
      %s1782 = scalar_lea.vmem %s6, %s1781
      // Predicated region
      $region45: #{tpu_custom_call.1} parent=43 // pred_check
        %p1783 = pneg %p166
      $region46: #{tpu_custom_call.1} parent=43 // pred_check_branch
        %1785 = sbr.rel (%p1783) target = $region48
      $region47: #{tpu_custom_call.1} parent=43 // pred_region
        _
      $region48: #{tpu_custom_call.1} parent=43 // pred_fallthru
        _
    $region44: #{tpu_custom_call.1} parent=5 // pred_fallthru
      _
    %p1786 = scmp.le.s32.totalorder 2, %s12
    // Predicated region
    $region49: #{tpu_custom_call.1} parent=5 // pred_check
      %p1787 = pneg %p1786
    $region50: #{tpu_custom_call.1} parent=5 // pred_check_branch
      %1789 = sbr.rel (%p1787) target = $region52
    $region51: #{tpu_custom_call.1} parent=5 // pred_region
      %s1790 = ssub.s32 %s12, 2
      // Predicated region
      $region53: #{tpu_custom_call.1} parent=51 // pred_check
        %p1791 = pneg %p172
      $region54: #{tpu_custom_call.1} parent=51 // pred_check_branch
        %1793 = sbr.rel (%p1791) target = $region56
      $region55: #{tpu_custom_call.1} parent=51 // pred_region
        %p1794 = scmp.lt.s32.totalorder %s18, 3
        %s1795 = scalar_select %p1794, %s18, 3
        %s1796 = smul.addr %s1795, 5
        %s1797 = smul.addr %s1796, 8
        %s1798 = scalar_lea.vmem %s6, %s1797
      $region56: #{tpu_custom_call.1} parent=51 // pred_fallthru
        _
    $region52: #{tpu_custom_call.1} parent=5 // pred_fallthru
      _
  $region6: #{tpu_custom_call.1} parent=0 // loop_footer
    %s16 = sadd.s32 1, %s12
  $region7: #{tpu_custom_call.1} parent=0 // loop_footer_branch
    %11 = sbr.rel target = $region3
  $region8: #{tpu_custom_call.1} parent=0 // loop_exit
    _

</llo_original>
